<compile_context>
chip_gen: v7x
topology: tpu7x:2x2x1
jax: 0.10.0
libtpu: 0.0.40
codegen_flags: <defaults>
</compile_context>

<pallas_src>
import math
from functools import partial

import jax
import jax.numpy as jnp
from jax import lax
from jax.experimental import pallas as pl
from jax.experimental.pallas import tpu as pltpu


def _causal_mha_kernel(x_ref, w_all_ref, b_all_ref, wproj_ref, bproj_ref, o_ref,
                       *, batch, seq_len, n_heads, d_head, mm_dtype):
    # x_ref:     (B*N, D)   tokens flattened into rows (single DMA), mm_dtype
    # w_all_ref: (D, 3*D)   fused KQV weights, columns = [K | Q*scale | V], head-major, mm_dtype
    # b_all_ref: (1, 3*D)   fused KQV bias row (Q slice pre-scaled), f32
    # wproj_ref: (D, D)     output projection (pre-transposed), mm_dtype
    # bproj_ref: (1, D)     output projection bias, f32
    # o_ref:     (B*N, D)   f32
    D = n_heads * d_head
    BN = batch * seq_len
    neg_big = jnp.float32(-1e30)          # finite fill: no NaN even for fully-masked rows

    # --- fused KQV projection: ONE MXU matmul for all heads (scale folded into W/b) ----------
    kqv_all = jnp.dot(x_ref[...], w_all_ref[...],
                      preferred_element_type=jnp.float32) + b_all_ref[...]      # (BN, 3D) f32

    # --- relayout to heads-leading batches: (BN, D) -> (H*B, N, dh) ---------------------------
    # built only from lane slices + aligned axis-0 concat + leading-dim reshape (cheap, robust)
    def split_heads(t2d):
        parts = [t2d[:, h * d_head:(h + 1) * d_head] for h in range(n_heads)]
        return jnp.concatenate(parts, axis=0).reshape(n_heads * batch, seq_len, d_head)

    k = split_heads(kqv_all[:, 0:D]).astype(mm_dtype)
    q = split_heads(kqv_all[:, D:2 * D]).astype(mm_dtype)    # 1/sqrt(dh) already in the weights
    v = split_heads(kqv_all[:, 2 * D:3 * D]).astype(mm_dtype)

    # --- scores for ALL (head, batch) pairs in one batched dot_general ------------------------
    # s[g, n, m] = q[g, n, :] . k[g, m, :]   (no k transpose materialized)
    s = lax.dot_general(q, k, (((2,), (2,)), ((0,), (0,))),
                        preferred_element_type=jnp.float32)                      # (H*B, N, N)

    # --- causal mask: (N, N) once, broadcast over the batched dim -----------------------------
    row = lax.broadcasted_iota(jnp.int32, (seq_len, seq_len), 0)
    col = lax.broadcasted_iota(jnp.int32, (seq_len, seq_len), 1)
    s = jnp.where((row >= col)[None, :, :], s, neg_big)

    # --- softmax (all f32; EUP reciprocal frees the VALU slot) --------------------------------
    m = jnp.max(s, axis=-1, keepdims=True)
    e = jnp.exp(s - m)
    denom = jnp.sum(e, axis=-1, keepdims=True)
    attn = (e * pl.reciprocal(denom, approx=True)).astype(mm_dtype)
    # TODO(synk): softmax_dropout / dropout have p=0.0 -> identity, omitted.

    # --- context for ALL (head, batch) pairs in one batched dot_general -----------------------
    ctx = lax.dot_general(attn, v, (((2,), (1,)), ((0,), (0,))),
                          preferred_element_type=jnp.float32)                    # (H*B, N, dh)

    # --- head concat (lane axis, head-major) + SINGLE output projection -----------------------
    ctx_flat = ctx.reshape(n_heads * BN, d_head)
    ctx_cat = jnp.concatenate([ctx_flat[h * BN:(h + 1) * BN, :] for h in range(n_heads)],
                              axis=-1).astype(mm_dtype)                          # (BN, D)
    out = jnp.dot(ctx_cat, wproj_ref[...],
                  preferred_element_type=jnp.float32) + bproj_ref[...]           # (BN, D) f32
    o_ref[...] = out.astype(o_ref.dtype)


def causal_self_attention(x, w_kqv, b_kqv, w_proj, b_proj, *, n_heads,
                          matmul_dtype=jnp.bfloat16):
    """x: (B, N, D); w_kqv: (H, D, 3*dh) pre-transposed per-head Linear weights (K|Q|V columns);
    b_kqv: (H, 1, 3*dh); w_proj: (D, D) pre-transposed; b_proj: (1, D).
    matmul_dtype: MXU operand dtype (bf16 recommended on v6e/v7x; f32 for exact parity)."""
    B, N, D = x.shape
    d_head = D // n_heads
    scale = jnp.float32(1.0 / math.sqrt(d_head))

    # ---- wrapper-side packing (done once; pure layout / constant folding on weights) ----
    def pack_w(w):  # (H, D, dh) -> (D, H*dh), head-major columns
        return jnp.transpose(w, (1, 0, 2)).reshape(D, n_heads * d_head)

    def pack_b(b):  # (H, 1, dh) -> (1, H*dh), head-major
        return b[:, 0, :].reshape(1, n_heads * d_head)

    wk = w_kqv[:, :, 0:d_head]
    wq = w_kqv[:, :, d_head:2 * d_head]
    wv = w_kqv[:, :, 2 * d_head:3 * d_head]
    # 1/sqrt(d_head) folded into the packed Q weight columns and Q bias slice
    w_all = jnp.concatenate([pack_w(wk), pack_w(wq) * scale, pack_w(wv)], axis=-1)   # (D, 3D)
    b_all = jnp.concatenate([pack_b(b_kqv[:, :, 0:d_head]),
                             pack_b(b_kqv[:, :, d_head:2 * d_head]) * scale,
                             pack_b(b_kqv[:, :, 2 * d_head:3 * d_head])], axis=-1)   # (1, 3D)

    # MXU operands pre-cast in the wrapper (halves operand DMA for bf16); biases stay f32.
    x2 = x.reshape(B * N, D).astype(matmul_dtype)     # fold batch into rows -> one DMA
    w_all = w_all.astype(matmul_dtype)
    w_proj_c = w_proj.astype(matmul_dtype)
    b_all = b_all.astype(jnp.float32)
    b_proj_c = b_proj.astype(jnp.float32)

    kernel = partial(_causal_mha_kernel, batch=B, seq_len=N,
                     n_heads=n_heads, d_head=d_head, mm_dtype=matmul_dtype)

    out2 = pl.pallas_call(
        kernel,
        out_shape=jax.ShapeDtypeStruct((B * N, D), x.dtype),
        grid=(1,),                  # single resident step at this toy size (see scaling TODO)
        in_specs=[
            pl.BlockSpec((B * N, D), lambda i: (0, 0)),
            pl.BlockSpec((D, 3 * D), lambda i: (0, 0)),
            pl.BlockSpec((1, 3 * D), lambda i: (0, 0)),
            pl.BlockSpec((D, D), lambda i: (0, 0)),
            pl.BlockSpec((1, D), lambda i: (0, 0)),
        ],
        out_specs=pl.BlockSpec((B * N, D), lambda i: (0, 0)),
        compiler_params=pltpu.CompilerParams(dimension_semantics=("arbitrary",)),
    )(x2, w_all, b_all, w_proj_c, b_proj_c)
    return out2.reshape(B, N, D)


def reference(x, w_kqv, b_kqv, w_proj, b_proj, *, n_heads):
    """Pure-JAX mirror of the PyTorch forward pass (for checking only)."""
    B, N, D = x.shape
    d_head = D // n_heads
    mask = jnp.tril(jnp.ones((N, N), dtype=bool))
    outs = []
    for h in range(n_heads):
        kqv_out = x @ w_kqv[h] + b_kqv[h]                 # (B, N, 3*D_head)
        k, q, v = jnp.split(kqv_out, 3, axis=-1)
        A = jnp.einsum('bnd,bmd->bnm', q, k) / math.sqrt(d_head)
        A = jnp.where(mask[None], A, -jnp.inf)
        w = jax.nn.softmax(A, axis=-1)
        outs.append(jnp.einsum('bnm,bmd->bnd', w, v))
    sa = jnp.concatenate(outs, axis=-1)
    return sa @ w_proj + b_proj


if __name__ == "__main__":
    B, N = 2, 8                 # batch, sequence length
    embed_dim, n_heads = 32, 4  # D, H -> D_head = 8
    d_head = embed_dim // n_heads

    key = jax.random.PRNGKey(0)
    kx, kw, kb, kpw, kpb = jax.random.split(key, 5)

    x = jax.random.normal(kx, (B, N, embed_dim), dtype=jnp.float32)
    # Shapes match nn.Linear(D, 3*D_head) per head (pre-transposed) and nn.Linear(D, D).
    bound = 1.0 / math.sqrt(embed_dim)
    w_kqv = jax.random.uniform(kw, (n_heads, embed_dim, 3 * d_head),
                               minval=-bound, maxval=bound, dtype=jnp.float32)
    b_kqv = jax.random.uniform(kb, (n_heads, 1, 3 * d_head),
                               minval=-bound, maxval=bound, dtype=jnp.float32)
    w_proj = jax.random.uniform(kpw, (embed_dim, embed_dim),
                                minval=-bound, maxval=bound, dtype=jnp.float32)
    b_proj = jax.random.uniform(kpb, (1, embed_dim),
                                minval=-bound, maxval=bound, dtype=jnp.float32)

    ref = reference(x, w_kqv, b_kqv, w_proj, b_proj, n_heads=n_heads)

    # f32 MXU operands: tight parity with the PyTorch-equivalent reference
    # (tolerance accounts for the EUP approximate reciprocal, ~2^-12 relative, in softmax).
    out_f32 = causal_self_attention(x, w_kqv, b_kqv, w_proj, b_proj,
                                    n_heads=n_heads, matmul_dtype=jnp.float32)
    out_f32 = jax.block_until_ready(out_f32)
    assert out_f32.shape == (B, N, embed_dim)
    assert jnp.allclose(out_f32, ref, atol=2e-3, rtol=2e-3), "f32 kernel mismatch vs reference"

    # bf16 MXU operands (recommended on v6e/v7x; MXU-input-only win on v5e):
    # looser tolerance for bf16 operand rounding, softmax itself stays f32.
    out_bf16 = causal_self_attention(x, w_kqv, b_kqv, w_proj, b_proj,
                                     n_heads=n_heads, matmul_dtype=jnp.bfloat16)
    out_bf16 = jax.block_until_ready(out_bf16)
    assert out_bf16.shape == (B, N, embed_dim)
    assert jnp.allclose(out_bf16, ref, atol=2e-2, rtol=2e-2), "bf16 kernel mismatch vs reference"

    print("KERNEL_OK")
</pallas_src>

<mosaic_0001>
module attributes {stable_mosaic.version = 11 : i64} {
  func.func @_causal_mha_kernel(%arg0: i32, %arg1: memref<16x32xf32, #tpu.memory_space<vmem>>, %arg2: memref<32x96xf32, #tpu.memory_space<vmem>>, %arg3: memref<1x96xf32, #tpu.memory_space<vmem>>, %arg4: memref<32x32xf32, #tpu.memory_space<vmem>>, %arg5: memref<1x32xf32, #tpu.memory_space<vmem>>, %arg6: memref<16x32xf32, #tpu.memory_space<vmem>>) attributes {dimension_semantics = [#tpu.dimension_semantics<arbitrary>], iteration_bounds = array<i64: 1>, scalar_prefetch = 0 : i64, scratch_operands = 0 : i64, tpu.core_type = #tpu.core_type<tc>, window_params = [{pipeline_mode = #tpu.pipeline_mode<synchronous>, transform_indices = @transform_0, window_bounds = array<i64: 16, 32>}, {pipeline_mode = #tpu.pipeline_mode<synchronous>, transform_indices = @transform_1, window_bounds = array<i64: 32, 96>}, {pipeline_mode = #tpu.pipeline_mode<synchronous>, transform_indices = @transform_2, window_bounds = array<i64: 1, 96>}, {pipeline_mode = #tpu.pipeline_mode<synchronous>, transform_indices = @transform_3, window_bounds = array<i64: 32, 32>}, {pipeline_mode = #tpu.pipeline_mode<synchronous>, transform_indices = @transform_4, window_bounds = array<i64: 1, 32>}, {pipeline_mode = #tpu.pipeline_mode<synchronous>, transform_indices = @transform_5, window_bounds = array<i64: 16, 32>}]} {
    %c0 = arith.constant 0 : index
    %c0_0 = arith.constant 0 : index
    %0 = vector.load %arg1[%c0, %c0_0] : memref<16x32xf32, #tpu.memory_space<vmem>>, vector<16x32xf32>
    %c0_1 = arith.constant 0 : index
    %c0_2 = arith.constant 0 : index
    %1 = vector.load %arg2[%c0_1, %c0_2] : memref<32x96xf32, #tpu.memory_space<vmem>>, vector<32x96xf32>
    %cst = arith.constant dense<0.000000e+00> : vector<16x96xf32>
    %2 = tpu.matmul %0, %1, %cst {dimension_numbers = #tpu.dot_dimension_numbers<[1], [0], [0], [1], [0, 0, 1, 1], [], []>} : vector<16x32xf32>, vector<32x96xf32>, vector<16x96xf32> -> vector<16x96xf32>
    %c0_3 = arith.constant 0 : index
    %c0_4 = arith.constant 0 : index
    %3 = vector.load %arg3[%c0_3, %c0_4] : memref<1x96xf32, #tpu.memory_space<vmem>>, vector<1x96xf32>
    %4 = vector.broadcast %3 : vector<1x96xf32> to vector<16x96xf32>
    %5 = arith.addf %2, %4 : vector<16x96xf32>
    %6 = vector.extract_strided_slice %5 {offsets = [0, 0], sizes = [16, 32], strides = [1, 1]} : vector<16x96xf32> to vector<16x32xf32>
    %7 = vector.extract_strided_slice %6 {offsets = [0, 0], sizes = [16, 8], strides = [1, 1]} : vector<16x32xf32> to vector<16x8xf32>
    %8 = vector.extract_strided_slice %6 {offsets = [0, 8], sizes = [16, 8], strides = [1, 1]} : vector<16x32xf32> to vector<16x8xf32>
    %9 = vector.extract_strided_slice %6 {offsets = [0, 16], sizes = [16, 8], strides = [1, 1]} : vector<16x32xf32> to vector<16x8xf32>
    %10 = vector.extract_strided_slice %6 {offsets = [0, 24], sizes = [16, 8], strides = [1, 1]} : vector<16x32xf32> to vector<16x8xf32>
    %11 = tpu.concatenate %7, %8, %9, %10 in 0 : vector<16x8xf32>, vector<16x8xf32>, vector<16x8xf32>, vector<16x8xf32> -> vector<64x8xf32>
    %12 = vector.shape_cast %11 : vector<64x8xf32> to vector<8x8x8xf32>
    %13 = vector.extract_strided_slice %5 {offsets = [0, 32], sizes = [16, 32], strides = [1, 1]} : vector<16x96xf32> to vector<16x32xf32>
    %14 = vector.extract_strided_slice %13 {offsets = [0, 0], sizes = [16, 8], strides = [1, 1]} : vector<16x32xf32> to vector<16x8xf32>
    %15 = vector.extract_strided_slice %13 {offsets = [0, 8], sizes = [16, 8], strides = [1, 1]} : vector<16x32xf32> to vector<16x8xf32>
    %16 = vector.extract_strided_slice %13 {offsets = [0, 16], sizes = [16, 8], strides = [1, 1]} : vector<16x32xf32> to vector<16x8xf32>
    %17 = vector.extract_strided_slice %13 {offsets = [0, 24], sizes = [16, 8], strides = [1, 1]} : vector<16x32xf32> to vector<16x8xf32>
    %18 = tpu.concatenate %14, %15, %16, %17 in 0 : vector<16x8xf32>, vector<16x8xf32>, vector<16x8xf32>, vector<16x8xf32> -> vector<64x8xf32>
    %19 = vector.shape_cast %18 : vector<64x8xf32> to vector<8x8x8xf32>
    %20 = vector.extract_strided_slice %5 {offsets = [0, 64], sizes = [16, 32], strides = [1, 1]} : vector<16x96xf32> to vector<16x32xf32>
    %21 = vector.extract_strided_slice %20 {offsets = [0, 0], sizes = [16, 8], strides = [1, 1]} : vector<16x32xf32> to vector<16x8xf32>
    %22 = vector.extract_strided_slice %20 {offsets = [0, 8], sizes = [16, 8], strides = [1, 1]} : vector<16x32xf32> to vector<16x8xf32>
    %23 = vector.extract_strided_slice %20 {offsets = [0, 16], sizes = [16, 8], strides = [1, 1]} : vector<16x32xf32> to vector<16x8xf32>
    %24 = vector.extract_strided_slice %20 {offsets = [0, 24], sizes = [16, 8], strides = [1, 1]} : vector<16x32xf32> to vector<16x8xf32>
    %25 = tpu.concatenate %21, %22, %23, %24 in 0 : vector<16x8xf32>, vector<16x8xf32>, vector<16x8xf32>, vector<16x8xf32> -> vector<64x8xf32>
    %26 = vector.shape_cast %25 : vector<64x8xf32> to vector<8x8x8xf32>
    %cst_5 = arith.constant dense<0.000000e+00> : vector<8x8x8xf32>
    %27 = tpu.matmul %19, %12, %cst_5 {dimension_numbers = #tpu.dot_dimension_numbers<[2], [2], [1], [1], [0, 0, 0, 1, 1, 1], [0], [0]>} : vector<8x8x8xf32>, vector<8x8x8xf32>, vector<8x8x8xf32> -> vector<8x8x8xf32>
    %28 = tpu.iota {dimensions = array<i32: 0>} : vector<8x8xi32>
    %29 = tpu.iota {dimensions = array<i32: 1>} : vector<8x8xi32>
    %30 = arith.cmpi sge, %28, %29 : vector<8x8xi32>
    %31 = vector.shape_cast %30 : vector<8x8xi1> to vector<1x8x8xi1>
    %cst_6 = arith.constant -1.000000e+30 : f32
    %32 = vector.shape_cast %31 : vector<1x8x8xi1> to vector<1x8x8xi1>
    %33 = vector.broadcast %32 : vector<1x8x8xi1> to vector<8x8x8xi1>
    %34 = vector.broadcast %cst_6 : f32 to vector<8x8x8xf32>
    %35 = arith.select %33, %27, %34 : vector<8x8x8xi1>, vector<8x8x8xf32>
    %cst_7 = arith.constant dense<0xFF800000> : vector<8x8xf32>
    %36 = vector.multi_reduction <maximumf>, %35, %cst_7 [2] : vector<8x8x8xf32> to vector<8x8xf32>
    %37 = vector.shape_cast %36 : vector<8x8xf32> to vector<8x8x1xf32>
    %38 = vector.broadcast %37 : vector<8x8x1xf32> to vector<8x8x8xf32>
    %39 = arith.subf %35, %38 : vector<8x8x8xf32>
    %40 = math.exp %39 : vector<8x8x8xf32>
    %cst_8 = arith.constant dense<0.000000e+00> : vector<8x8xf32>
    %41 = vector.multi_reduction <add>, %40, %cst_8 [2] : vector<8x8x8xf32> to vector<8x8xf32>
    %42 = vector.shape_cast %41 : vector<8x8xf32> to vector<8x8x1xf32>
    %43 = tpu.reciprocal %42 {approx = true} : vector<8x8x1xf32> -> vector<8x8x1xf32>
    %44 = vector.broadcast %43 : vector<8x8x1xf32> to vector<8x8x8xf32>
    %45 = arith.mulf %40, %44 : vector<8x8x8xf32>
    %cst_9 = arith.constant dense<0.000000e+00> : vector<8x8x8xf32>
    %46 = tpu.matmul %45, %26, %cst_9 {dimension_numbers = #tpu.dot_dimension_numbers<[2], [1], [1], [2], [0, 0, 0, 1, 1, 2], [0], [0]>} : vector<8x8x8xf32>, vector<8x8x8xf32>, vector<8x8x8xf32> -> vector<8x8x8xf32>
    %47 = vector.shape_cast %46 : vector<8x8x8xf32> to vector<64x8xf32>
    %48 = vector.extract_strided_slice %47 {offsets = [0, 0], sizes = [16, 8], strides = [1, 1]} : vector<64x8xf32> to vector<16x8xf32>
    %49 = vector.extract_strided_slice %47 {offsets = [16, 0], sizes = [16, 8], strides = [1, 1]} : vector<64x8xf32> to vector<16x8xf32>
    %50 = vector.extract_strided_slice %47 {offsets = [32, 0], sizes = [16, 8], strides = [1, 1]} : vector<64x8xf32> to vector<16x8xf32>
    %51 = vector.extract_strided_slice %47 {offsets = [48, 0], sizes = [16, 8], strides = [1, 1]} : vector<64x8xf32> to vector<16x8xf32>
    %52 = tpu.concatenate %48, %49, %50, %51 in 1 : vector<16x8xf32>, vector<16x8xf32>, vector<16x8xf32>, vector<16x8xf32> -> vector<16x32xf32>
    %c0_10 = arith.constant 0 : index
    %c0_11 = arith.constant 0 : index
    %53 = vector.load %arg4[%c0_10, %c0_11] : memref<32x32xf32, #tpu.memory_space<vmem>>, vector<32x32xf32>
    %cst_12 = arith.constant dense<0.000000e+00> : vector<16x32xf32>
    %54 = tpu.matmul %52, %53, %cst_12 {dimension_numbers = #tpu.dot_dimension_numbers<[1], [0], [0], [1], [0, 0, 1, 1], [], []>} : vector<16x32xf32>, vector<32x32xf32>, vector<16x32xf32> -> vector<16x32xf32>
    %c0_13 = arith.constant 0 : index
    %c0_14 = arith.constant 0 : index
    %55 = vector.load %arg5[%c0_13, %c0_14] : memref<1x32xf32, #tpu.memory_space<vmem>>, vector<1x32xf32>
    %56 = vector.broadcast %55 : vector<1x32xf32> to vector<16x32xf32>
    %57 = arith.addf %54, %56 : vector<16x32xf32>
    %c0_15 = arith.constant 0 : index
    %c0_16 = arith.constant 0 : index
    %58 = vector.load %arg6[%c0_15, %c0_16] : memref<16x32xf32, #tpu.memory_space<vmem>>, vector<16x32xf32>
    tpu.vector_store %arg6[%c0_15, %c0_16], %57 {strides = array<i32>} : memref<16x32xf32, #tpu.memory_space<vmem>>, vector<16x32xf32>,
    return
  }
  func.func @transform_0(%arg0: i32) -> (i32, i32) {
    %c0_i32 = arith.constant 0 : i32
    %c0_i32_0 = arith.constant 0 : i32
    %c0_i32_1 = arith.constant 0 : i32
    return %c0_i32, %c0_i32_0 : i32, i32
  }
  func.func @transform_1(%arg0: i32) -> (i32, i32) {
    %c0_i32 = arith.constant 0 : i32
    %c0_i32_0 = arith.constant 0 : i32
    %c0_i32_1 = arith.constant 0 : i32
    return %c0_i32, %c0_i32_0 : i32, i32
  }
  func.func @transform_2(%arg0: i32) -> (i32, i32) {
    %c0_i32 = arith.constant 0 : i32
    %c0_i32_0 = arith.constant 0 : i32
    %c0_i32_1 = arith.constant 0 : i32
    return %c0_i32, %c0_i32_0 : i32, i32
  }
  func.func @transform_3(%arg0: i32) -> (i32, i32) {
    %c0_i32 = arith.constant 0 : i32
    %c0_i32_0 = arith.constant 0 : i32
    %c0_i32_1 = arith.constant 0 : i32
    return %c0_i32, %c0_i32_0 : i32, i32
  }
  func.func @transform_4(%arg0: i32) -> (i32, i32) {
    %c0_i32 = arith.constant 0 : i32
    %c0_i32_0 = arith.constant 0 : i32
    %c0_i32_1 = arith.constant 0 : i32
    return %c0_i32, %c0_i32_0 : i32, i32
  }
  func.func @transform_5(%arg0: i32) -> (i32, i32) {
    %c0_i32 = arith.constant 0 : i32
    %c0_i32_0 = arith.constant 0 : i32
    %c0_i32_1 = arith.constant 0 : i32
    return %c0_i32, %c0_i32_0 : i32, i32
  }
}

</mosaic_0001>

<llo_original>
// kernel: tpu_custom_call.1
$region0: #{tpu_custom_call.1}
  #allocation0 [shape = 'u32[]', space=smem, size = 0x4, offset = 0x4, fixed_abs, tag = 'smem constant byte address 0x4 - core index']
  #allocation1 [shape = 'u32[144,128]{1,0:T(1,128)}', space=vmem, size = 0x12000, scoped, tag = 'internal scratch']
  %s0 = inlined_call_operand.hbm [shape: f32[16,32], index: 0, kind: input, shape index: {}]
  %s1 = inlined_call_operand.hbm [shape: f32[32,96], index: 1, kind: input, shape index: {}]
  %s2 = inlined_call_operand.vmem [shape: f32[1,96], index: 2, kind: input, shape index: {}]
  %s3 = inlined_call_operand.hbm [shape: f32[32,32], index: 3, kind: input, shape index: {}]
  %s4 = inlined_call_operand.vmem [shape: f32[1,32], index: 4, kind: input, shape index: {}]
  %s5 = inlined_call_operand.hbm [shape: f32[16,32], index: 5, kind: output, shape index: {}]
  %s6 = sld [smem:[#allocation0]]
  $region42: #{tpu_custom_call.1} parent=0
    _
  %s8 = ssub.s32 1, %s6
  %s9 = scalar_select 0, %s8, %s6
  $region1: #{tpu_custom_call.1} parent=0
    #allocation2 [shape = 'u8[8192]{0}', space=vmem, size = 0x2000, scoped, tag = 'input window, operand 0, single buffered']
    #allocation3 [shape = 's32[1]{0}', space=sflag, size = 0x4, scoped, tag = 'scoped memory for tpu_custom_call.1']
    #allocation4 [shape = 's32[1]{0}', space=sflag, size = 0x4, scoped, tag = 'scoped memory for tpu_custom_call.1']
    #allocation5 [shape = 'u8[16384]{0}', space=vmem, size = 0x4000, scoped, tag = 'input window, operand 1, single buffered']
    #allocation6 [shape = 's32[1]{0}', space=sflag, size = 0x4, scoped, tag = 'scoped memory for tpu_custom_call.1']
    #allocation7 [shape = 'u8[16384]{0}', space=vmem, size = 0x4000, scoped, tag = 'input window, operand 3, single buffered']
    #allocation8 [shape = 'u8[8192]{0}', space=vmem, size = 0x2000, scoped, tag = 'output window, operand 0, single buffered']
    %10 = vsyncpa [#allocation3], 0
    %11 = vsyncpa [#allocation6], 0
    %12 = vsyncpa [#allocation4], 0
    // Predicated region
    $region2: #{tpu_custom_call.1} parent=1 // pred_check
      _
    $region3: #{tpu_custom_call.1} parent=1 // pred_check_branch
      %14 = sbr.rel (0) target = $region5
    $region4: #{tpu_custom_call.1} parent=1 // pred_region
      %s16 = ssub.s32 256, 256
      %17 = vsyncadd [#allocation3], %s16
      %s18 = sshll.u32 [#allocation2], 4
      %s19 = int_to_ptr.vmem [resolvable:$true] %s18
      %24 = dma.hbm_to_vmem [thread:$0]  %s0, 256, %s19, [#allocation3], 128, 128, 8
    $region5: #{tpu_custom_call.1} parent=1 // pred_fallthru
      _
    // Predicated region
    $region6: #{tpu_custom_call.1} parent=1 // pred_check
      _
    $region7: #{tpu_custom_call.1} parent=1 // pred_check_branch
      %26 = sbr.rel (0) target = $region9
    $region8: #{tpu_custom_call.1} parent=1 // pred_region
      %s28 = ssub.s32 512, 512
      %29 = vsyncadd [#allocation6], %s28
      %s30 = sshll.u32 [#allocation5], 4
      %s31 = int_to_ptr.vmem [resolvable:$true] %s30
      %36 = dma.hbm_to_vmem [thread:$0]  %s1, 512, %s31, [#allocation6], 128, 128, 8
    $region9: #{tpu_custom_call.1} parent=1 // pred_fallthru
      _
    // Predicated region
    $region10: #{tpu_custom_call.1} parent=1 // pred_check
      _
    $region11: #{tpu_custom_call.1} parent=1 // pred_check_branch
      %38 = sbr.rel (0) target = $region13
    $region12: #{tpu_custom_call.1} parent=1 // pred_region
      _
    $region13: #{tpu_custom_call.1} parent=1 // pred_fallthru
      _
    // Predicated region
    $region14: #{tpu_custom_call.1} parent=1 // pred_check
      _
    $region15: #{tpu_custom_call.1} parent=1 // pred_check_branch
      %40 = sbr.rel (0) target = $region17
    $region16: #{tpu_custom_call.1} parent=1 // pred_region
      %s42 = ssub.s32 512, 512
      %43 = vsyncadd [#allocation6], %s42
      %s44 = sshll.u32 [#allocation7], 4
      %s45 = int_to_ptr.vmem [resolvable:$true] %s44
      %50 = dma.hbm_to_vmem [thread:$0]  %s3, 512, %s45, [#allocation6], 128, 128, 8
    $region17: #{tpu_custom_call.1} parent=1 // pred_fallthru
      _
    // Predicated region
    $region18: #{tpu_custom_call.1} parent=1 // pred_check
      _
    $region19: #{tpu_custom_call.1} parent=1 // pred_check_branch
      %52 = sbr.rel (0) target = $region21
    $region20: #{tpu_custom_call.1} parent=1 // pred_region
      _
    $region21: #{tpu_custom_call.1} parent=1 // pred_fallthru
      _
    // Predicated region
    $region22: #{tpu_custom_call.1} parent=1 // pred_check
      _
    $region23: #{tpu_custom_call.1} parent=1 // pred_check_branch
      %54 = sbr.rel (0) target = $region25
    $region24: #{tpu_custom_call.1} parent=1 // pred_region
      %55 = dma.done [#allocation3], 256
    $region25: #{tpu_custom_call.1} parent=1 // pred_fallthru
      _
    // Predicated region
    $region26: #{tpu_custom_call.1} parent=1 // pred_check
      _
    $region27: #{tpu_custom_call.1} parent=1 // pred_check_branch
      %57 = sbr.rel (0) target = $region29
    $region28: #{tpu_custom_call.1} parent=1 // pred_region
      %58 = dma.done [#allocation6], 512
    $region29: #{tpu_custom_call.1} parent=1 // pred_fallthru
      _
    // Predicated region
    $region30: #{tpu_custom_call.1} parent=1 // pred_check
      _
    $region31: #{tpu_custom_call.1} parent=1 // pred_check_branch
      %60 = sbr.rel (0) target = $region33
    $region32: #{tpu_custom_call.1} parent=1 // pred_region
      %61 = dma.done [#allocation6], 512
    $region33: #{tpu_custom_call.1} parent=1 // pred_fallthru
      _
    %v62 = vld [vmem:[#allocation2] sm:$0xff]
    %v63 = vld [vmem:[#allocation2 + $0x8] sm:$0xff]
    %v64 = vld [vmem:[#allocation5] sm:$0xff]
    %v65 = vld [vmem:[#allocation5 + $0x8] sm:$0xff]
    %v66 = vld [vmem:[#allocation5 + $0x10] sm:$0xff]
    %v67 = vld [vmem:[#allocation5 + $0x18] sm:$0xff]
    %v68 = vld [vmem:[%s2] sm:$0x1]
    %v70 = vlaneseq
    %v71 = vshrl.u32 %v70, 7
    %v72 = vsub.s32 0, %v71
    %v73 = vrot.slane %v68, %v72
    %vm75 = vcmask 261120
    %v77 = vsel %vm75, %v62, 0
    %v80 = vsel %vm75, %v63, 0
    %82 = vmatprep.subr.mxu0 0.0
    %83 = vmatpush1.msra.mxu0 %v64
    %84 = vmatprep.subr.mxu0 0.0
    %85 = vmatpush1.msra.mxu0 %v65
    %86 = vmatprep.subr.mxu0 0.0
    %87 = vmatpush1.msra.mxu0 %v66
    %88 = vmatprep.subr.mxu0 0.0
    %89 = vmatpush1.msra.mxu0 %v67
    %90 = vmatprep.subr.mxu0 0.0
    %91 = vmatpush1.msra.mxu0 0.0
    %92 = vmatprep.subr.mxu0 0.0
    %93 = vmatpush1.msra.mxu0 0.0
    %94 = vmatprep.subr.mxu0 0.0
    %95 = vmatpush1.msra.mxu0 0.0
    %96 = vmatprep.subr.mxu0 0.0
    %97 = vmatpush1.msra.mxu0 0.0
    %98 = vmatprep.subr.mxu0 0.0
    %99 = vmatpush1.msra.mxu0 0.0
    %100 = vmatprep.subr.mxu0 0.0
    %101 = vmatpush1.msra.mxu0 0.0
    %102 = vmatprep.subr.mxu0 0.0
    %103 = vmatpush1.msra.mxu0 0.0
    %104 = vmatprep.subr.mxu0 0.0
    %105 = vmatpush1.msra.mxu0 0.0
    %106 = vmatprep.subr.mxu0 0.0
    %107 = vmatpush1.msra.mxu0 0.0
    %108 = vmatprep.subr.mxu0 0.0
    %109 = vmatpush1.msra.mxu0 0.0
    %110 = vmatprep.subr.mxu0 0.0
    %111 = vmatpush1.msra.mxu0 0.0
    %112 = vmatprep.subr.mxu0 0.0
    %113 = vmatpush1.msra.mxu0 0.0
    %114 = vmatprep.subr.mxu0 0.0
    %115 = vmatpush1.msra.mxu0 0.0
    %116 = vmatprep.subr.mxu0 0.0
    %117 = vmatpush1.msra.mxu0 0.0
    %118 = vmatprep.subr.mxu0 0.0
    %119 = vmatpush1.msra.mxu0 0.0
    %120 = vmatprep.subr.mxu0 0.0
    %121 = vmatpush1.msra.mxu0 0.0
    %122 = vmatprep.subr.mxu0 0.0
    %123 = vmatpush1.msra.mxu0 0.0
    %124 = vmatprep.subr.mxu0 0.0
    %125 = vmatpush1.msra.mxu0 0.0
    %126 = vmatprep.subr.mxu0 0.0
    %127 = vmatpush1.msra.mxu0 0.0
    %128 = vmatprep.subr.mxu0 0.0
    %129 = vmatpush1.msra.mxu0 0.0
    %130 = vmatprep.subr.mxu0 0.0
    %131 = vmatpush1.msra.mxu0 0.0
    %132 = vmatprep.subr.mxu0 0.0
    %133 = vmatpush1.msra.mxu0 0.0
    %134 = vmatprep.subr.mxu0 0.0
    %135 = vmatpush1.msra.mxu0 0.0
    %136 = vmatprep.subr.mxu0 0.0
    %137 = vmatpush1.msra.mxu0 0.0
    %138 = vmatprep.subr.mxu0 0.0
    %139 = vmatpush1.msra.mxu0 0.0
    %140 = vmatprep.subr.mxu0 0.0
    %141 = vmatpush1.msra.mxu0 0.0
    %142 = vmatprep.subr.mxu0 0.0
    %143 = vmatpush1.msra.mxu0 0.0
    %144 = vmatprep.subr.mxu0 0.0
    %145 = vmatpush1.msra.mxu0 0.0
    %146 = vmatprep.mubr.f32.mxu0 0.0
    %147 = vmatmul.mubr.f32.gmra.mrb[0].mxu0 %v77
    %v148 = vpop.f32.mrb[0].mxu0
    %v149 = vadd.f32 %v73, %v148
    %v150 = vpop.f32.mrb[0].mxu0
    %151 = vmatprep.mubr.f32.mxu0 0.0
    %152 = vmatmul.mubr.f32.gmra.mrb[0].mxu0 %v80
    %v153 = vpop.f32.mrb[0].mxu0
    %v154 = vadd.f32 %v73, %v153
    %v155 = vpop.f32.mrb[0].mxu0
    %156 = vdwg.mxu0
    %159 = vrot.lane.b32.xlu0 %v149, 120
    %v160 = vpop.permute.xlu0 %159
    %161 = vrot.lane.b32.xlu0 %v154, 120
    %v162 = vpop.permute.xlu0 %161
    %163 = vrot.lane.b32.xlu0 %v149, 112
    %v164 = vpop.permute.xlu0 %163
    %165 = vrot.lane.b32.xlu0 %v154, 112
    %v166 = vpop.permute.xlu0 %165
    %167 = vrot.lane.b32.xlu0 %v149, 104
    %v168 = vpop.permute.xlu0 %167
    %169 = vrot.lane.b32.xlu0 %v154, 104
    %v170 = vpop.permute.xlu0 %169
    %171 = vrot.lane.b32.xlu0 %v149, 96
    %v172 = vpop.permute.xlu0 %171
    %vm173 = vcmask 64512
    %v174 = vsel %vm173, %v172, 0
    %v176 = vsel %vm173, %v149, 0
    %178 = vmatprep.subr.mxu0 0.0
    %179 = vmatpush1.xpose.msra.mxu0 %v176
    %180 = vmatprep.subr.mxu0 0.0
    %181 = vmatpush1.xpose.msra.mxu0 0.0
    %182 = vmatprep.subr.mxu0 0.0
    %183 = vmatpush1.xpose.msra.mxu0 0.0
    %184 = vmatprep.subr.mxu0 0.0
    %185 = vmatpush1.xpose.msra.mxu0 0.0
    %186 = vmatprep.subr.mxu0 0.0
    %187 = vmatpush1.xpose.msra.mxu0 0.0
    %188 = vmatprep.subr.mxu0 0.0
    %189 = vmatpush1.xpose.msra.mxu0 0.0
    %190 = vmatprep.subr.mxu0 0.0
    %191 = vmatpush1.xpose.msra.mxu0 0.0
    %192 = vmatprep.subr.mxu0 0.0
    %193 = vmatpush1.xpose.msra.mxu0 0.0
    %194 = vmatprep.subr.mxu0 0.0
    %195 = vmatpush1.xpose.msra.mxu0 0.0
    %196 = vmatprep.subr.mxu0 0.0
    %197 = vmatpush1.xpose.msra.mxu0 0.0
    %198 = vmatprep.subr.mxu0 0.0
    %199 = vmatpush1.xpose.msra.mxu0 0.0
    %200 = vmatprep.subr.mxu0 0.0
    %201 = vmatpush1.xpose.msra.mxu0 0.0
    %202 = vmatprep.subr.mxu0 0.0
    %203 = vmatpush1.xpose.msra.mxu0 0.0
    %204 = vmatprep.subr.mxu0 0.0
    %205 = vmatpush1.xpose.msra.mxu0 0.0
    %206 = vmatprep.subr.mxu0 0.0
    %207 = vmatpush1.xpose.msra.mxu0 0.0
    %208 = vmatprep.subr.mxu0 0.0
    %209 = vmatpush1.xpose.msra.mxu0 0.0
    %210 = vmatprep.subr.mxu0 0.0
    %211 = vmatpush1.xpose.msra.mxu0 0.0
    %212 = vmatprep.subr.mxu0 0.0
    %213 = vmatpush1.xpose.msra.mxu0 0.0
    %214 = vmatprep.subr.mxu0 0.0
    %215 = vmatpush1.xpose.msra.mxu0 0.0
    %216 = vmatprep.subr.mxu0 0.0
    %217 = vmatpush1.xpose.msra.mxu0 0.0
    %218 = vmatprep.subr.mxu0 0.0
    %219 = vmatpush1.xpose.msra.mxu0 0.0
    %220 = vmatprep.subr.mxu0 0.0
    %221 = vmatpush1.xpose.msra.mxu0 0.0
    %222 = vmatprep.subr.mxu0 0.0
    %223 = vmatpush1.xpose.msra.mxu0 0.0
    %224 = vmatprep.subr.mxu0 0.0
    %225 = vmatpush1.xpose.msra.mxu0 0.0
    %226 = vmatprep.subr.mxu0 0.0
    %227 = vmatpush1.xpose.msra.mxu0 0.0
    %228 = vmatprep.subr.mxu0 0.0
    %229 = vmatpush1.xpose.msra.mxu0 0.0
    %230 = vmatprep.subr.mxu0 0.0
    %231 = vmatpush1.xpose.msra.mxu0 0.0
    %232 = vmatprep.subr.mxu0 0.0
    %233 = vmatpush1.xpose.msra.mxu0 0.0
    %234 = vmatprep.subr.mxu0 0.0
    %235 = vmatpush1.xpose.msra.mxu0 0.0
    %236 = vmatprep.subr.mxu0 0.0
    %237 = vmatpush1.xpose.msra.mxu0 0.0
    %238 = vmatprep.subr.mxu0 0.0
    %239 = vmatpush1.xpose.msra.mxu0 0.0
    %240 = vmatprep.subr.mxu0 0.0
    %241 = vmatpush1.xpose.msra.mxu0 0.0
    %242 = vmatprep.mubr.f32.mxu0 0.0
    %243 = vmatmul.mubr.f32.gmra.mrb[0].mxu0 %v174
    %v244 = vpop.f32.mrb[0].mxu0
    %v245 = vadd.f32 0.0, %v244
    %v246 = vpop.f32.mrb[0].mxu0
    %247 = vdwg.mxu0
    %248 = vrot.lane.b32.xlu0 %v154, 96
    %v249 = vpop.permute.xlu0 %248
    %v250 = vsel %vm173, %v249, 0
    %v252 = vsel %vm173, %v154, 0
    %254 = vmatprep.subr.mxu0 0.0
    %255 = vmatpush1.xpose.msra.mxu0 %v252
    %256 = vmatprep.subr.mxu0 0.0
    %257 = vmatpush1.xpose.msra.mxu0 0.0
    %258 = vmatprep.subr.mxu0 0.0
    %259 = vmatpush1.xpose.msra.mxu0 0.0
    %260 = vmatprep.subr.mxu0 0.0
    %261 = vmatpush1.xpose.msra.mxu0 0.0
    %262 = vmatprep.subr.mxu0 0.0
    %263 = vmatpush1.xpose.msra.mxu0 0.0
    %264 = vmatprep.subr.mxu0 0.0
    %265 = vmatpush1.xpose.msra.mxu0 0.0
    %266 = vmatprep.subr.mxu0 0.0
    %267 = vmatpush1.xpose.msra.mxu0 0.0
    %268 = vmatprep.subr.mxu0 0.0
    %269 = vmatpush1.xpose.msra.mxu0 0.0
    %270 = vmatprep.subr.mxu0 0.0
    %271 = vmatpush1.xpose.msra.mxu0 0.0
    %272 = vmatprep.subr.mxu0 0.0
    %273 = vmatpush1.xpose.msra.mxu0 0.0
    %274 = vmatprep.subr.mxu0 0.0
    %275 = vmatpush1.xpose.msra.mxu0 0.0
    %276 = vmatprep.subr.mxu0 0.0
    %277 = vmatpush1.xpose.msra.mxu0 0.0
    %278 = vmatprep.subr.mxu0 0.0
    %279 = vmatpush1.xpose.msra.mxu0 0.0
    %280 = vmatprep.subr.mxu0 0.0
    %281 = vmatpush1.xpose.msra.mxu0 0.0
    %282 = vmatprep.subr.mxu0 0.0
    %283 = vmatpush1.xpose.msra.mxu0 0.0
    %284 = vmatprep.subr.mxu0 0.0
    %285 = vmatpush1.xpose.msra.mxu0 0.0
    %286 = vmatprep.subr.mxu0 0.0
    %287 = vmatpush1.xpose.msra.mxu0 0.0
    %288 = vmatprep.subr.mxu0 0.0
    %289 = vmatpush1.xpose.msra.mxu0 0.0
    %290 = vmatprep.subr.mxu0 0.0
    %291 = vmatpush1.xpose.msra.mxu0 0.0
    %292 = vmatprep.subr.mxu0 0.0
    %293 = vmatpush1.xpose.msra.mxu0 0.0
    %294 = vmatprep.subr.mxu0 0.0
    %295 = vmatpush1.xpose.msra.mxu0 0.0
    %296 = vmatprep.subr.mxu0 0.0
    %297 = vmatpush1.xpose.msra.mxu0 0.0
    %298 = vmatprep.subr.mxu0 0.0
    %299 = vmatpush1.xpose.msra.mxu0 0.0
    %300 = vmatprep.subr.mxu0 0.0
    %301 = vmatpush1.xpose.msra.mxu0 0.0
    %302 = vmatprep.subr.mxu0 0.0
    %303 = vmatpush1.xpose.msra.mxu0 0.0
    %304 = vmatprep.subr.mxu0 0.0
    %305 = vmatpush1.xpose.msra.mxu0 0.0
    %306 = vmatprep.subr.mxu0 0.0
    %307 = vmatpush1.xpose.msra.mxu0 0.0
    %308 = vmatprep.subr.mxu0 0.0
    %309 = vmatpush1.xpose.msra.mxu0 0.0
    %310 = vmatprep.subr.mxu0 0.0
    %311 = vmatpush1.xpose.msra.mxu0 0.0
    %312 = vmatprep.subr.mxu0 0.0
    %313 = vmatpush1.xpose.msra.mxu0 0.0
    %314 = vmatprep.subr.mxu0 0.0
    %315 = vmatpush1.xpose.msra.mxu0 0.0
    %316 = vmatprep.subr.mxu0 0.0
    %317 = vmatpush1.xpose.msra.mxu0 0.0
    %318 = vmatprep.mubr.f32.mxu0 0.0
    %319 = vmatmul.mubr.f32.gmra.mrb[0].mxu0 %v250
    %v320 = vpop.f32.mrb[0].mxu0
    %v321 = vadd.f32 0.0, %v320
    %v322 = vpop.f32.mrb[0].mxu0
    %323 = vdwg.mxu0
    %324 = vrot.lane.b32.xlu0 %v160, 96
    %v325 = vpop.permute.xlu0 %324
    %v326 = vsel %vm173, %v325, 0
    %v328 = vsel %vm173, %v160, 0
    %330 = vmatprep.subr.mxu0 0.0
    %331 = vmatpush1.xpose.msra.mxu0 %v328
    %332 = vmatprep.subr.mxu0 0.0
    %333 = vmatpush1.xpose.msra.mxu0 0.0
    %334 = vmatprep.subr.mxu0 0.0
    %335 = vmatpush1.xpose.msra.mxu0 0.0
    %336 = vmatprep.subr.mxu0 0.0
    %337 = vmatpush1.xpose.msra.mxu0 0.0
    %338 = vmatprep.subr.mxu0 0.0
    %339 = vmatpush1.xpose.msra.mxu0 0.0
    %340 = vmatprep.subr.mxu0 0.0
    %341 = vmatpush1.xpose.msra.mxu0 0.0
    %342 = vmatprep.subr.mxu0 0.0
    %343 = vmatpush1.xpose.msra.mxu0 0.0
    %344 = vmatprep.subr.mxu0 0.0
    %345 = vmatpush1.xpose.msra.mxu0 0.0
    %346 = vmatprep.subr.mxu0 0.0
    %347 = vmatpush1.xpose.msra.mxu0 0.0
    %348 = vmatprep.subr.mxu0 0.0
    %349 = vmatpush1.xpose.msra.mxu0 0.0
    %350 = vmatprep.subr.mxu0 0.0
    %351 = vmatpush1.xpose.msra.mxu0 0.0
    %352 = vmatprep.subr.mxu0 0.0
    %353 = vmatpush1.xpose.msra.mxu0 0.0
    %354 = vmatprep.subr.mxu0 0.0
    %355 = vmatpush1.xpose.msra.mxu0 0.0
    %356 = vmatprep.subr.mxu0 0.0
    %357 = vmatpush1.xpose.msra.mxu0 0.0
    %358 = vmatprep.subr.mxu0 0.0
    %359 = vmatpush1.xpose.msra.mxu0 0.0
    %360 = vmatprep.subr.mxu0 0.0
    %361 = vmatpush1.xpose.msra.mxu0 0.0
    %362 = vmatprep.subr.mxu0 0.0
    %363 = vmatpush1.xpose.msra.mxu0 0.0
    %364 = vmatprep.subr.mxu0 0.0
    %365 = vmatpush1.xpose.msra.mxu0 0.0
    %366 = vmatprep.subr.mxu0 0.0
    %367 = vmatpush1.xpose.msra.mxu0 0.0
    %368 = vmatprep.subr.mxu0 0.0
    %369 = vmatpush1.xpose.msra.mxu0 0.0
    %370 = vmatprep.subr.mxu0 0.0
    %371 = vmatpush1.xpose.msra.mxu0 0.0
    %372 = vmatprep.subr.mxu0 0.0
    %373 = vmatpush1.xpose.msra.mxu0 0.0
    %374 = vmatprep.subr.mxu0 0.0
    %375 = vmatpush1.xpose.msra.mxu0 0.0
    %376 = vmatprep.subr.mxu0 0.0
    %377 = vmatpush1.xpose.msra.mxu0 0.0
    %378 = vmatprep.subr.mxu0 0.0
    %379 = vmatpush1.xpose.msra.mxu0 0.0
    %380 = vmatprep.subr.mxu0 0.0
    %381 = vmatpush1.xpose.msra.mxu0 0.0
    %382 = vmatprep.subr.mxu0 0.0
    %383 = vmatpush1.xpose.msra.mxu0 0.0
    %384 = vmatprep.subr.mxu0 0.0
    %385 = vmatpush1.xpose.msra.mxu0 0.0
    %386 = vmatprep.subr.mxu0 0.0
    %387 = vmatpush1.xpose.msra.mxu0 0.0
    %388 = vmatprep.subr.mxu0 0.0
    %389 = vmatpush1.xpose.msra.mxu0 0.0
    %390 = vmatprep.subr.mxu0 0.0
    %391 = vmatpush1.xpose.msra.mxu0 0.0
    %392 = vmatprep.subr.mxu0 0.0
    %393 = vmatpush1.xpose.msra.mxu0 0.0
    %394 = vmatprep.mubr.f32.mxu0 0.0
    %395 = vmatmul.mubr.f32.gmra.mrb[0].mxu0 %v326
    %v396 = vpop.f32.mrb[0].mxu0
    %v397 = vadd.f32 0.0, %v396
    %v398 = vpop.f32.mrb[0].mxu0
    %399 = vdwg.mxu0
    %400 = vrot.lane.b32.xlu0 %v162, 96
    %v401 = vpop.permute.xlu0 %400
    %v402 = vsel %vm173, %v401, 0
    %v404 = vsel %vm173, %v162, 0
    %406 = vmatprep.subr.mxu0 0.0
    %407 = vmatpush1.xpose.msra.mxu0 %v404
    %408 = vmatprep.subr.mxu0 0.0
    %409 = vmatpush1.xpose.msra.mxu0 0.0
    %410 = vmatprep.subr.mxu0 0.0
    %411 = vmatpush1.xpose.msra.mxu0 0.0
    %412 = vmatprep.subr.mxu0 0.0
    %413 = vmatpush1.xpose.msra.mxu0 0.0
    %414 = vmatprep.subr.mxu0 0.0
    %415 = vmatpush1.xpose.msra.mxu0 0.0
    %416 = vmatprep.subr.mxu0 0.0
    %417 = vmatpush1.xpose.msra.mxu0 0.0
    %418 = vmatprep.subr.mxu0 0.0
    %419 = vmatpush1.xpose.msra.mxu0 0.0
    %420 = vmatprep.subr.mxu0 0.0
    %421 = vmatpush1.xpose.msra.mxu0 0.0
    %422 = vmatprep.subr.mxu0 0.0
    %423 = vmatpush1.xpose.msra.mxu0 0.0
    %424 = vmatprep.subr.mxu0 0.0
    %425 = vmatpush1.xpose.msra.mxu0 0.0
    %426 = vmatprep.subr.mxu0 0.0
    %427 = vmatpush1.xpose.msra.mxu0 0.0
    %428 = vmatprep.subr.mxu0 0.0
    %429 = vmatpush1.xpose.msra.mxu0 0.0
    %430 = vmatprep.subr.mxu0 0.0
    %431 = vmatpush1.xpose.msra.mxu0 0.0
    %432 = vmatprep.subr.mxu0 0.0
    %433 = vmatpush1.xpose.msra.mxu0 0.0
    %434 = vmatprep.subr.mxu0 0.0
    %435 = vmatpush1.xpose.msra.mxu0 0.0
    %436 = vmatprep.subr.mxu0 0.0
    %437 = vmatpush1.xpose.msra.mxu0 0.0
    %438 = vmatprep.subr.mxu0 0.0
    %439 = vmatpush1.xpose.msra.mxu0 0.0
    %440 = vmatprep.subr.mxu0 0.0
    %441 = vmatpush1.xpose.msra.mxu0 0.0
    %442 = vmatprep.subr.mxu0 0.0
    %443 = vmatpush1.xpose.msra.mxu0 0.0
    %444 = vmatprep.subr.mxu0 0.0
    %445 = vmatpush1.xpose.msra.mxu0 0.0
    %446 = vmatprep.subr.mxu0 0.0
    %447 = vmatpush1.xpose.msra.mxu0 0.0
    %448 = vmatprep.subr.mxu0 0.0
    %449 = vmatpush1.xpose.msra.mxu0 0.0
    %450 = vmatprep.subr.mxu0 0.0
    %451 = vmatpush1.xpose.msra.mxu0 0.0
    %452 = vmatprep.subr.mxu0 0.0
    %453 = vmatpush1.xpose.msra.mxu0 0.0
    %454 = vmatprep.subr.mxu0 0.0
    %455 = vmatpush1.xpose.msra.mxu0 0.0
    %456 = vmatprep.subr.mxu0 0.0
    %457 = vmatpush1.xpose.msra.mxu0 0.0
    %458 = vmatprep.subr.mxu0 0.0
    %459 = vmatpush1.xpose.msra.mxu0 0.0
    %460 = vmatprep.subr.mxu0 0.0
    %461 = vmatpush1.xpose.msra.mxu0 0.0
    %462 = vmatprep.subr.mxu0 0.0
    %463 = vmatpush1.xpose.msra.mxu0 0.0
    %464 = vmatprep.subr.mxu0 0.0
    %465 = vmatpush1.xpose.msra.mxu0 0.0
    %466 = vmatprep.subr.mxu0 0.0
    %467 = vmatpush1.xpose.msra.mxu0 0.0
    %468 = vmatprep.subr.mxu0 0.0
    %469 = vmatpush1.xpose.msra.mxu0 0.0
    %470 = vmatprep.mubr.f32.mxu0 0.0
    %471 = vmatmul.mubr.f32.gmra.mrb[0].mxu0 %v402
    %v472 = vpop.f32.mrb[0].mxu0
    %v473 = vadd.f32 0.0, %v472
    %v474 = vpop.f32.mrb[0].mxu0
    %475 = vdwg.mxu0
    %476 = vrot.lane.b32.xlu0 %v164, 96
    %v477 = vpop.permute.xlu0 %476
    %v478 = vsel %vm173, %v477, 0
    %v480 = vsel %vm173, %v164, 0
    %482 = vmatprep.subr.mxu0 0.0
    %483 = vmatpush1.xpose.msra.mxu0 %v480
    %484 = vmatprep.subr.mxu0 0.0
    %485 = vmatpush1.xpose.msra.mxu0 0.0
    %486 = vmatprep.subr.mxu0 0.0
    %487 = vmatpush1.xpose.msra.mxu0 0.0
    %488 = vmatprep.subr.mxu0 0.0
    %489 = vmatpush1.xpose.msra.mxu0 0.0
    %490 = vmatprep.subr.mxu0 0.0
    %491 = vmatpush1.xpose.msra.mxu0 0.0
    %492 = vmatprep.subr.mxu0 0.0
    %493 = vmatpush1.xpose.msra.mxu0 0.0
    %494 = vmatprep.subr.mxu0 0.0
    %495 = vmatpush1.xpose.msra.mxu0 0.0
    %496 = vmatprep.subr.mxu0 0.0
    %497 = vmatpush1.xpose.msra.mxu0 0.0
    %498 = vmatprep.subr.mxu0 0.0
    %499 = vmatpush1.xpose.msra.mxu0 0.0
    %500 = vmatprep.subr.mxu0 0.0
    %501 = vmatpush1.xpose.msra.mxu0 0.0
    %502 = vmatprep.subr.mxu0 0.0
    %503 = vmatpush1.xpose.msra.mxu0 0.0
    %504 = vmatprep.subr.mxu0 0.0
    %505 = vmatpush1.xpose.msra.mxu0 0.0
    %506 = vmatprep.subr.mxu0 0.0
    %507 = vmatpush1.xpose.msra.mxu0 0.0
    %508 = vmatprep.subr.mxu0 0.0
    %509 = vmatpush1.xpose.msra.mxu0 0.0
    %510 = vmatprep.subr.mxu0 0.0
    %511 = vmatpush1.xpose.msra.mxu0 0.0
    %512 = vmatprep.subr.mxu0 0.0
    %513 = vmatpush1.xpose.msra.mxu0 0.0
    %514 = vmatprep.subr.mxu0 0.0
    %515 = vmatpush1.xpose.msra.mxu0 0.0
    %516 = vmatprep.subr.mxu0 0.0
    %517 = vmatpush1.xpose.msra.mxu0 0.0
    %518 = vmatprep.subr.mxu0 0.0
    %519 = vmatpush1.xpose.msra.mxu0 0.0
    %520 = vmatprep.subr.mxu0 0.0
    %521 = vmatpush1.xpose.msra.mxu0 0.0
    %522 = vmatprep.subr.mxu0 0.0
    %523 = vmatpush1.xpose.msra.mxu0 0.0
    %524 = vmatprep.subr.mxu0 0.0
    %525 = vmatpush1.xpose.msra.mxu0 0.0
    %526 = vmatprep.subr.mxu0 0.0
    %527 = vmatpush1.xpose.msra.mxu0 0.0
    %528 = vmatprep.subr.mxu0 0.0
    %529 = vmatpush1.xpose.msra.mxu0 0.0
    %530 = vmatprep.subr.mxu0 0.0
    %531 = vmatpush1.xpose.msra.mxu0 0.0
    %532 = vmatprep.subr.mxu0 0.0
    %533 = vmatpush1.xpose.msra.mxu0 0.0
    %534 = vmatprep.subr.mxu0 0.0
    %535 = vmatpush1.xpose.msra.mxu0 0.0
    %536 = vmatprep.subr.mxu0 0.0
    %537 = vmatpush1.xpose.msra.mxu0 0.0
    %538 = vmatprep.subr.mxu0 0.0
    %539 = vmatpush1.xpose.msra.mxu0 0.0
    %540 = vmatprep.subr.mxu0 0.0
    %541 = vmatpush1.xpose.msra.mxu0 0.0
    %542 = vmatprep.subr.mxu0 0.0
    %543 = vmatpush1.xpose.msra.mxu0 0.0
    %544 = vmatprep.subr.mxu0 0.0
    %545 = vmatpush1.xpose.msra.mxu0 0.0
    %546 = vmatprep.mubr.f32.mxu0 0.0
    %547 = vmatmul.mubr.f32.gmra.mrb[0].mxu0 %v478
    %v548 = vpop.f32.mrb[0].mxu0
    %v549 = vadd.f32 0.0, %v548
    %v550 = vpop.f32.mrb[0].mxu0
    %551 = vdwg.mxu0
    %552 = vrot.lane.b32.xlu0 %v166, 96
    %v553 = vpop.permute.xlu0 %552
    %v554 = vsel %vm173, %v553, 0
    %v556 = vsel %vm173, %v166, 0
    %558 = vmatprep.subr.mxu0 0.0
    %559 = vmatpush1.xpose.msra.mxu0 %v556
    %560 = vmatprep.subr.mxu0 0.0
    %561 = vmatpush1.xpose.msra.mxu0 0.0
    %562 = vmatprep.subr.mxu0 0.0
    %563 = vmatpush1.xpose.msra.mxu0 0.0
    %564 = vmatprep.subr.mxu0 0.0
    %565 = vmatpush1.xpose.msra.mxu0 0.0
    %566 = vmatprep.subr.mxu0 0.0
    %567 = vmatpush1.xpose.msra.mxu0 0.0
    %568 = vmatprep.subr.mxu0 0.0
    %569 = vmatpush1.xpose.msra.mxu0 0.0
    %570 = vmatprep.subr.mxu0 0.0
    %571 = vmatpush1.xpose.msra.mxu0 0.0
    %572 = vmatprep.subr.mxu0 0.0
    %573 = vmatpush1.xpose.msra.mxu0 0.0
    %574 = vmatprep.subr.mxu0 0.0
    %575 = vmatpush1.xpose.msra.mxu0 0.0
    %576 = vmatprep.subr.mxu0 0.0
    %577 = vmatpush1.xpose.msra.mxu0 0.0
    %578 = vmatprep.subr.mxu0 0.0
    %579 = vmatpush1.xpose.msra.mxu0 0.0
    %580 = vmatprep.subr.mxu0 0.0
    %581 = vmatpush1.xpose.msra.mxu0 0.0
    %582 = vmatprep.subr.mxu0 0.0
    %583 = vmatpush1.xpose.msra.mxu0 0.0
    %584 = vmatprep.subr.mxu0 0.0
    %585 = vmatpush1.xpose.msra.mxu0 0.0
    %586 = vmatprep.subr.mxu0 0.0
    %587 = vmatpush1.xpose.msra.mxu0 0.0
    %588 = vmatprep.subr.mxu0 0.0
    %589 = vmatpush1.xpose.msra.mxu0 0.0
    %590 = vmatprep.subr.mxu0 0.0
    %591 = vmatpush1.xpose.msra.mxu0 0.0
    %592 = vmatprep.subr.mxu0 0.0
    %593 = vmatpush1.xpose.msra.mxu0 0.0
    %594 = vmatprep.subr.mxu0 0.0
    %595 = vmatpush1.xpose.msra.mxu0 0.0
    %596 = vmatprep.subr.mxu0 0.0
    %597 = vmatpush1.xpose.msra.mxu0 0.0
    %598 = vmatprep.subr.mxu0 0.0
    %599 = vmatpush1.xpose.msra.mxu0 0.0
    %600 = vmatprep.subr.mxu0 0.0
    %601 = vmatpush1.xpose.msra.mxu0 0.0
    %602 = vmatprep.subr.mxu0 0.0
    %603 = vmatpush1.xpose.msra.mxu0 0.0
    %604 = vmatprep.subr.mxu0 0.0
    %605 = vmatpush1.xpose.msra.mxu0 0.0
    %606 = vmatprep.subr.mxu0 0.0
    %607 = vmatpush1.xpose.msra.mxu0 0.0
    %608 = vmatprep.subr.mxu0 0.0
    %609 = vmatpush1.xpose.msra.mxu0 0.0
    %610 = vmatprep.subr.mxu0 0.0
    %611 = vmatpush1.xpose.msra.mxu0 0.0
    %612 = vmatprep.subr.mxu0 0.0
    %613 = vmatpush1.xpose.msra.mxu0 0.0
    %614 = vmatprep.subr.mxu0 0.0
    %615 = vmatpush1.xpose.msra.mxu0 0.0
    %616 = vmatprep.subr.mxu0 0.0
    %617 = vmatpush1.xpose.msra.mxu0 0.0
    %618 = vmatprep.subr.mxu0 0.0
    %619 = vmatpush1.xpose.msra.mxu0 0.0
    %620 = vmatprep.subr.mxu0 0.0
    %621 = vmatpush1.xpose.msra.mxu0 0.0
    %622 = vmatprep.mubr.f32.mxu0 0.0
    %623 = vmatmul.mubr.f32.gmra.mrb[0].mxu0 %v554
    %v624 = vpop.f32.mrb[0].mxu0
    %v625 = vadd.f32 0.0, %v624
    %v626 = vpop.f32.mrb[0].mxu0
    %627 = vdwg.mxu0
    %628 = vrot.lane.b32.xlu0 %v168, 96
    %v629 = vpop.permute.xlu0 %628
    %v630 = vsel %vm173, %v629, 0
    %v632 = vsel %vm173, %v168, 0
    %634 = vmatprep.subr.mxu0 0.0
    %635 = vmatpush1.xpose.msra.mxu0 %v632
    %636 = vmatprep.subr.mxu0 0.0
    %637 = vmatpush1.xpose.msra.mxu0 0.0
    %638 = vmatprep.subr.mxu0 0.0
    %639 = vmatpush1.xpose.msra.mxu0 0.0
    %640 = vmatprep.subr.mxu0 0.0
    %641 = vmatpush1.xpose.msra.mxu0 0.0
    %642 = vmatprep.subr.mxu0 0.0
    %643 = vmatpush1.xpose.msra.mxu0 0.0
    %644 = vmatprep.subr.mxu0 0.0
    %645 = vmatpush1.xpose.msra.mxu0 0.0
    %646 = vmatprep.subr.mxu0 0.0
    %647 = vmatpush1.xpose.msra.mxu0 0.0
    %648 = vmatprep.subr.mxu0 0.0
    %649 = vmatpush1.xpose.msra.mxu0 0.0
    %650 = vmatprep.subr.mxu0 0.0
    %651 = vmatpush1.xpose.msra.mxu0 0.0
    %652 = vmatprep.subr.mxu0 0.0
    %653 = vmatpush1.xpose.msra.mxu0 0.0
    %654 = vmatprep.subr.mxu0 0.0
    %655 = vmatpush1.xpose.msra.mxu0 0.0
    %656 = vmatprep.subr.mxu0 0.0
    %657 = vmatpush1.xpose.msra.mxu0 0.0
    %658 = vmatprep.subr.mxu0 0.0
    %659 = vmatpush1.xpose.msra.mxu0 0.0
    %660 = vmatprep.subr.mxu0 0.0
    %661 = vmatpush1.xpose.msra.mxu0 0.0
    %662 = vmatprep.subr.mxu0 0.0
    %663 = vmatpush1.xpose.msra.mxu0 0.0
    %664 = vmatprep.subr.mxu0 0.0
    %665 = vmatpush1.xpose.msra.mxu0 0.0
    %666 = vmatprep.subr.mxu0 0.0
    %667 = vmatpush1.xpose.msra.mxu0 0.0
    %668 = vmatprep.subr.mxu0 0.0
    %669 = vmatpush1.xpose.msra.mxu0 0.0
    %670 = vmatprep.subr.mxu0 0.0
    %671 = vmatpush1.xpose.msra.mxu0 0.0
    %672 = vmatprep.subr.mxu0 0.0
    %673 = vmatpush1.xpose.msra.mxu0 0.0
    %674 = vmatprep.subr.mxu0 0.0
    %675 = vmatpush1.xpose.msra.mxu0 0.0
    %676 = vmatprep.subr.mxu0 0.0
    %677 = vmatpush1.xpose.msra.mxu0 0.0
    %678 = vmatprep.subr.mxu0 0.0
    %679 = vmatpush1.xpose.msra.mxu0 0.0
    %680 = vmatprep.subr.mxu0 0.0
    %681 = vmatpush1.xpose.msra.mxu0 0.0
    %682 = vmatprep.subr.mxu0 0.0
    %683 = vmatpush1.xpose.msra.mxu0 0.0
    %684 = vmatprep.subr.mxu0 0.0
    %685 = vmatpush1.xpose.msra.mxu0 0.0
    %686 = vmatprep.subr.mxu0 0.0
    %687 = vmatpush1.xpose.msra.mxu0 0.0
    %688 = vmatprep.subr.mxu0 0.0
    %689 = vmatpush1.xpose.msra.mxu0 0.0
    %690 = vmatprep.subr.mxu0 0.0
    %691 = vmatpush1.xpose.msra.mxu0 0.0
    %692 = vmatprep.subr.mxu0 0.0
    %693 = vmatpush1.xpose.msra.mxu0 0.0
    %694 = vmatprep.subr.mxu0 0.0
    %695 = vmatpush1.xpose.msra.mxu0 0.0
    %696 = vmatprep.subr.mxu0 0.0
    %697 = vmatpush1.xpose.msra.mxu0 0.0
    %698 = vmatprep.mubr.f32.mxu0 0.0
    %699 = vmatmul.mubr.f32.gmra.mrb[0].mxu0 %v630
    %v700 = vpop.f32.mrb[0].mxu0
    %v701 = vadd.f32 0.0, %v700
    %v702 = vpop.f32.mrb[0].mxu0
    %703 = vdwg.mxu0
    %704 = vrot.lane.b32.xlu0 %v170, 96
    %v705 = vpop.permute.xlu0 %704
    %v706 = vsel %vm173, %v705, 0
    %v708 = vsel %vm173, %v170, 0
    %710 = vmatprep.subr.mxu0 0.0
    %711 = vmatpush1.xpose.msra.mxu0 %v708
    %712 = vmatprep.subr.mxu0 0.0
    %713 = vmatpush1.xpose.msra.mxu0 0.0
    %714 = vmatprep.subr.mxu0 0.0
    %715 = vmatpush1.xpose.msra.mxu0 0.0
    %716 = vmatprep.subr.mxu0 0.0
    %717 = vmatpush1.xpose.msra.mxu0 0.0
    %718 = vmatprep.subr.mxu0 0.0
    %719 = vmatpush1.xpose.msra.mxu0 0.0
    %720 = vmatprep.subr.mxu0 0.0
    %721 = vmatpush1.xpose.msra.mxu0 0.0
    %722 = vmatprep.subr.mxu0 0.0
    %723 = vmatpush1.xpose.msra.mxu0 0.0
    %724 = vmatprep.subr.mxu0 0.0
    %725 = vmatpush1.xpose.msra.mxu0 0.0
    %726 = vmatprep.subr.mxu0 0.0
    %727 = vmatpush1.xpose.msra.mxu0 0.0
    %728 = vmatprep.subr.mxu0 0.0
    %729 = vmatpush1.xpose.msra.mxu0 0.0
    %730 = vmatprep.subr.mxu0 0.0
    %731 = vmatpush1.xpose.msra.mxu0 0.0
    %732 = vmatprep.subr.mxu0 0.0
    %733 = vmatpush1.xpose.msra.mxu0 0.0
    %734 = vmatprep.subr.mxu0 0.0
    %735 = vmatpush1.xpose.msra.mxu0 0.0
    %736 = vmatprep.subr.mxu0 0.0
    %737 = vmatpush1.xpose.msra.mxu0 0.0
    %738 = vmatprep.subr.mxu0 0.0
    %739 = vmatpush1.xpose.msra.mxu0 0.0
    %740 = vmatprep.subr.mxu0 0.0
    %741 = vmatpush1.xpose.msra.mxu0 0.0
    %742 = vmatprep.subr.mxu0 0.0
    %743 = vmatpush1.xpose.msra.mxu0 0.0
    %744 = vmatprep.subr.mxu0 0.0
    %745 = vmatpush1.xpose.msra.mxu0 0.0
    %746 = vmatprep.subr.mxu0 0.0
    %747 = vmatpush1.xpose.msra.mxu0 0.0
    %748 = vmatprep.subr.mxu0 0.0
    %749 = vmatpush1.xpose.msra.mxu0 0.0
    %750 = vmatprep.subr.mxu0 0.0
    %751 = vmatpush1.xpose.msra.mxu0 0.0
    %752 = vmatprep.subr.mxu0 0.0
    %753 = vmatpush1.xpose.msra.mxu0 0.0
    %754 = vmatprep.subr.mxu0 0.0
    %755 = vmatpush1.xpose.msra.mxu0 0.0
    %756 = vmatprep.subr.mxu0 0.0
    %757 = vmatpush1.xpose.msra.mxu0 0.0
    %758 = vmatprep.subr.mxu0 0.0
    %759 = vmatpush1.xpose.msra.mxu0 0.0
    %760 = vmatprep.subr.mxu0 0.0
    %761 = vmatpush1.xpose.msra.mxu0 0.0
    %762 = vmatprep.subr.mxu0 0.0
    %763 = vmatpush1.xpose.msra.mxu0 0.0
    %764 = vmatprep.subr.mxu0 0.0
    %765 = vmatpush1.xpose.msra.mxu0 0.0
    %766 = vmatprep.subr.mxu0 0.0
    %767 = vmatpush1.xpose.msra.mxu0 0.0
    %768 = vmatprep.subr.mxu0 0.0
    %769 = vmatpush1.xpose.msra.mxu0 0.0
    %770 = vmatprep.subr.mxu0 0.0
    %771 = vmatpush1.xpose.msra.mxu0 0.0
    %772 = vmatprep.subr.mxu0 0.0
    %773 = vmatpush1.xpose.msra.mxu0 0.0
    %774 = vmatprep.mubr.f32.mxu0 0.0
    %775 = vmatmul.mubr.f32.gmra.mrb[0].mxu0 %v706
    %v776 = vpop.f32.mrb[0].mxu0
    %v777 = vadd.f32 0.0, %v776
    %v778 = vpop.f32.mrb[0].mxu0
    %779 = vdwg.mxu0
    %v780 = vlaneseq
    %v781 = vshrl.u32 %v780, 7
    %v782 = vlaneseq
    %v783 = vand.u32 %v782, 127
    %vm784 = vcmp.ge.s32.totalorder %v781, %v783
    %v785 = vsel %vm784, 1, 0
    %vm786 = vcmp.eq.s32.totalorder %v785, 1
    %v787 = vsel %vm786, %v245, -1e+30
    %v788 = vsel %vm786, %v321, -1e+30
    %v789 = vsel %vm786, %v397, -1e+30
    %v790 = vsel %vm786, %v473, -1e+30
    %v791 = vsel %vm786, %v549, -1e+30
    %v792 = vsel %vm786, %v625, -1e+30
    %v793 = vsel %vm786, %v701, -1e+30
    %v794 = vsel %vm786, %v777, -1e+30
    %v795 = vsel %vm173, %v787, -inf
    %796 = vmax.xlane.f32.xlu0 %v795
    %v797 = vpop.xlane.xlu0 %796
    %v798 = vsel %vm173, %v788, -inf
    %799 = vmax.xlane.f32.xlu0 %v798
    %v800 = vpop.xlane.xlu0 %799
    %v801 = vsel %vm173, %v789, -inf
    %802 = vmax.xlane.f32.xlu0 %v801
    %v803 = vpop.xlane.xlu0 %802
    %v804 = vsel %vm173, %v790, -inf
    %805 = vmax.xlane.f32.xlu0 %v804
    %v806 = vpop.xlane.xlu0 %805
    %v807 = vsel %vm173, %v791, -inf
    %808 = vmax.xlane.f32.xlu0 %v807
    %v809 = vpop.xlane.xlu0 %808
    %v810 = vsel %vm173, %v792, -inf
    %811 = vmax.xlane.f32.xlu0 %v810
    %v812 = vpop.xlane.xlu0 %811
    %v813 = vsel %vm173, %v793, -inf
    %814 = vmax.xlane.f32.xlu0 %v813
    %v815 = vpop.xlane.xlu0 %814
    %v816 = vsel %vm173, %v794, -inf
    %817 = vmax.xlane.f32.xlu0 %v816
    %v818 = vpop.xlane.xlu0 %817
    %v819 = vsub.f32 %v787, %v797
    %v820 = vsub.f32 %v788, %v800
    %v821 = vsub.f32 %v789, %v803
    %v822 = vsub.f32 %v790, %v806
    %v823 = vsub.f32 %v791, %v809
    %v824 = vsub.f32 %v792, %v812
    %v825 = vsub.f32 %v793, %v815
    %v826 = vsub.f32 %v794, %v818
    %v827 = vmul.f32 %v819, 1.442695
    %v828 = vpow.pop %v827
    %v829 = vmul.f32 %v820, 1.442695
    %v830 = vpow.pop %v829
    %v831 = vmul.f32 %v821, 1.442695
    %v832 = vpow.pop %v831
    %v833 = vmul.f32 %v822, 1.442695
    %v834 = vpow.pop %v833
    %v835 = vmul.f32 %v823, 1.442695
    %v836 = vpow.pop %v835
    %v837 = vmul.f32 %v824, 1.442695
    %v838 = vpow.pop %v837
    %v839 = vmul.f32 %v825, 1.442695
    %v840 = vpow.pop %v839
    %v841 = vmul.f32 %v826, 1.442695
    %v842 = vpow.pop %v841
    %v843 = vsel %vm173, %v828, 0.0
    %844 = vadd.xlane.f32.xlu0 %v843
    %v845 = vpop.xlane.xlu0 %844
    %v846 = vsel %vm173, %v830, 0.0
    %847 = vadd.xlane.f32.xlu0 %v846
    %v848 = vpop.xlane.xlu0 %847
    %v849 = vsel %vm173, %v832, 0.0
    %850 = vadd.xlane.f32.xlu0 %v849
    %v851 = vpop.xlane.xlu0 %850
    %v852 = vsel %vm173, %v834, 0.0
    %853 = vadd.xlane.f32.xlu0 %v852
    %v854 = vpop.xlane.xlu0 %853
    %v855 = vsel %vm173, %v836, 0.0
    %856 = vadd.xlane.f32.xlu0 %v855
    %v857 = vpop.xlane.xlu0 %856
    %v858 = vsel %vm173, %v838, 0.0
    %859 = vadd.xlane.f32.xlu0 %v858
    %v860 = vpop.xlane.xlu0 %859
    %v861 = vsel %vm173, %v840, 0.0
    %862 = vadd.xlane.f32.xlu0 %v861
    %v863 = vpop.xlane.xlu0 %862
    %v864 = vsel %vm173, %v842, 0.0
    %865 = vadd.xlane.f32.xlu0 %v864
    %v866 = vpop.xlane.xlu0 %865
    %v867 = vrcp.pop %v845
    %v868 = vrcp.pop %v848
    %v869 = vrcp.pop %v851
    %v870 = vrcp.pop %v854
    %v871 = vrcp.pop %v857
    %v872 = vrcp.pop %v860
    %v873 = vrcp.pop %v863
    %v874 = vrcp.pop %v866
    %v875 = vmul.f32 %v828, %v867
    %v876 = vmul.f32 %v830, %v868
    %v877 = vmul.f32 %v832, %v869
    %v878 = vmul.f32 %v834, %v870
    %v879 = vmul.f32 %v836, %v871
    %v880 = vmul.f32 %v838, %v872
    %v881 = vmul.f32 %v840, %v873
    %v882 = vmul.f32 %v842, %v874
    %883 = vrot.lane.b32.xlu0 %v149, 64
    %v884 = vpop.permute.xlu0 %883
    %v887 = vsel %vm173, %v875, 0
    %889 = vmatprep.subr.mxu0 0.0
    %890 = vmatpush1.msra.mxu0 %v884
    %891 = vmatprep.subr.mxu0 0.0
    %892 = vmatpush1.msra.mxu0 0.0
    %893 = vmatprep.subr.mxu0 0.0
    %894 = vmatpush1.msra.mxu0 0.0
    %895 = vmatprep.subr.mxu0 0.0
    %896 = vmatpush1.msra.mxu0 0.0
    %897 = vmatprep.subr.mxu0 0.0
    %898 = vmatpush1.msra.mxu0 0.0
    %899 = vmatprep.subr.mxu0 0.0
    %900 = vmatpush1.msra.mxu0 0.0
    %901 = vmatprep.subr.mxu0 0.0
    %902 = vmatpush1.msra.mxu0 0.0
    %903 = vmatprep.subr.mxu0 0.0
    %904 = vmatpush1.msra.mxu0 0.0
    %905 = vmatprep.subr.mxu0 0.0
    %906 = vmatpush1.msra.mxu0 0.0
    %907 = vmatprep.subr.mxu0 0.0
    %908 = vmatpush1.msra.mxu0 0.0
    %909 = vmatprep.subr.mxu0 0.0
    %910 = vmatpush1.msra.mxu0 0.0
    %911 = vmatprep.subr.mxu0 0.0
    %912 = vmatpush1.msra.mxu0 0.0
    %913 = vmatprep.subr.mxu0 0.0
    %914 = vmatpush1.msra.mxu0 0.0
    %915 = vmatprep.subr.mxu0 0.0
    %916 = vmatpush1.msra.mxu0 0.0
    %917 = vmatprep.subr.mxu0 0.0
    %918 = vmatpush1.msra.mxu0 0.0
    %919 = vmatprep.subr.mxu0 0.0
    %920 = vmatpush1.msra.mxu0 0.0
    %921 = vmatprep.subr.mxu0 0.0
    %922 = vmatpush1.msra.mxu0 0.0
    %923 = vmatprep.subr.mxu0 0.0
    %924 = vmatpush1.msra.mxu0 0.0
    %925 = vmatprep.subr.mxu0 0.0
    %926 = vmatpush1.msra.mxu0 0.0
    %927 = vmatprep.subr.mxu0 0.0
    %928 = vmatpush1.msra.mxu0 0.0
    %929 = vmatprep.subr.mxu0 0.0
    %930 = vmatpush1.msra.mxu0 0.0
    %931 = vmatprep.subr.mxu0 0.0
    %932 = vmatpush1.msra.mxu0 0.0
    %933 = vmatprep.subr.mxu0 0.0
    %934 = vmatpush1.msra.mxu0 0.0
    %935 = vmatprep.subr.mxu0 0.0
    %936 = vmatpush1.msra.mxu0 0.0
    %937 = vmatprep.subr.mxu0 0.0
    %938 = vmatpush1.msra.mxu0 0.0
    %939 = vmatprep.subr.mxu0 0.0
    %940 = vmatpush1.msra.mxu0 0.0
    %941 = vmatprep.subr.mxu0 0.0
    %942 = vmatpush1.msra.mxu0 0.0
    %943 = vmatprep.subr.mxu0 0.0
    %944 = vmatpush1.msra.mxu0 0.0
    %945 = vmatprep.subr.mxu0 0.0
    %946 = vmatpush1.msra.mxu0 0.0
    %947 = vmatprep.subr.mxu0 0.0
    %948 = vmatpush1.msra.mxu0 0.0
    %949 = vmatprep.subr.mxu0 0.0
    %950 = vmatpush1.msra.mxu0 0.0
    %951 = vmatprep.subr.mxu0 0.0
    %952 = vmatpush1.msra.mxu0 0.0
    %953 = vmatprep.mubr.f32.mxu0 0.0
    %954 = vmatmul.mubr.f32.gmra.mrb[0].mxu0 %v887
    %v955 = vpop.f32.mrb[0].mxu0
    %v956 = vadd.f32 0.0, %v955
    %v957 = vpop.f32.mrb[0].mxu0
    %958 = vdwg.mxu0
    %959 = vrot.lane.b32.xlu0 %v154, 64
    %v960 = vpop.permute.xlu0 %959
    %v963 = vsel %vm173, %v876, 0
    %965 = vmatprep.subr.mxu0 0.0
    %966 = vmatpush1.msra.mxu0 %v960
    %967 = vmatprep.subr.mxu0 0.0
    %968 = vmatpush1.msra.mxu0 0.0
    %969 = vmatprep.subr.mxu0 0.0
    %970 = vmatpush1.msra.mxu0 0.0
    %971 = vmatprep.subr.mxu0 0.0
    %972 = vmatpush1.msra.mxu0 0.0
    %973 = vmatprep.subr.mxu0 0.0
    %974 = vmatpush1.msra.mxu0 0.0
    %975 = vmatprep.subr.mxu0 0.0
    %976 = vmatpush1.msra.mxu0 0.0
    %977 = vmatprep.subr.mxu0 0.0
    %978 = vmatpush1.msra.mxu0 0.0
    %979 = vmatprep.subr.mxu0 0.0
    %980 = vmatpush1.msra.mxu0 0.0
    %981 = vmatprep.subr.mxu0 0.0
    %982 = vmatpush1.msra.mxu0 0.0
    %983 = vmatprep.subr.mxu0 0.0
    %984 = vmatpush1.msra.mxu0 0.0
    %985 = vmatprep.subr.mxu0 0.0
    %986 = vmatpush1.msra.mxu0 0.0
    %987 = vmatprep.subr.mxu0 0.0
    %988 = vmatpush1.msra.mxu0 0.0
    %989 = vmatprep.subr.mxu0 0.0
    %990 = vmatpush1.msra.mxu0 0.0
    %991 = vmatprep.subr.mxu0 0.0
    %992 = vmatpush1.msra.mxu0 0.0
    %993 = vmatprep.subr.mxu0 0.0
    %994 = vmatpush1.msra.mxu0 0.0
    %995 = vmatprep.subr.mxu0 0.0
    %996 = vmatpush1.msra.mxu0 0.0
    %997 = vmatprep.subr.mxu0 0.0
    %998 = vmatpush1.msra.mxu0 0.0
    %999 = vmatprep.subr.mxu0 0.0
    %1000 = vmatpush1.msra.mxu0 0.0
    %1001 = vmatprep.subr.mxu0 0.0
    %1002 = vmatpush1.msra.mxu0 0.0
    %1003 = vmatprep.subr.mxu0 0.0
    %1004 = vmatpush1.msra.mxu0 0.0
    %1005 = vmatprep.subr.mxu0 0.0
    %1006 = vmatpush1.msra.mxu0 0.0
    %1007 = vmatprep.subr.mxu0 0.0
    %1008 = vmatpush1.msra.mxu0 0.0
    %1009 = vmatprep.subr.mxu0 0.0
    %1010 = vmatpush1.msra.mxu0 0.0
    %1011 = vmatprep.subr.mxu0 0.0
    %1012 = vmatpush1.msra.mxu0 0.0
    %1013 = vmatprep.subr.mxu0 0.0
    %1014 = vmatpush1.msra.mxu0 0.0
    %1015 = vmatprep.subr.mxu0 0.0
    %1016 = vmatpush1.msra.mxu0 0.0
    %1017 = vmatprep.subr.mxu0 0.0
    %1018 = vmatpush1.msra.mxu0 0.0
    %1019 = vmatprep.subr.mxu0 0.0
    %1020 = vmatpush1.msra.mxu0 0.0
    %1021 = vmatprep.subr.mxu0 0.0
    %1022 = vmatpush1.msra.mxu0 0.0
    %1023 = vmatprep.subr.mxu0 0.0
    %1024 = vmatpush1.msra.mxu0 0.0
    %1025 = vmatprep.subr.mxu0 0.0
    %1026 = vmatpush1.msra.mxu0 0.0
    %1027 = vmatprep.subr.mxu0 0.0
    %1028 = vmatpush1.msra.mxu0 0.0
    %1029 = vmatprep.mubr.f32.mxu0 0.0
    %1030 = vmatmul.mubr.f32.gmra.mrb[0].mxu0 %v963
    %v1031 = vpop.f32.mrb[0].mxu0
    %v1032 = vadd.f32 0.0, %v1031
    %v1033 = vpop.f32.mrb[0].mxu0
    %1034 = vdwg.mxu0
    %1035 = vrot.lane.b32.xlu0 %v160, 64
    %v1036 = vpop.permute.xlu0 %1035
    %v1039 = vsel %vm173, %v877, 0
    %1041 = vmatprep.subr.mxu0 0.0
    %1042 = vmatpush1.msra.mxu0 %v1036
    %1043 = vmatprep.subr.mxu0 0.0
    %1044 = vmatpush1.msra.mxu0 0.0
    %1045 = vmatprep.subr.mxu0 0.0
    %1046 = vmatpush1.msra.mxu0 0.0
    %1047 = vmatprep.subr.mxu0 0.0
    %1048 = vmatpush1.msra.mxu0 0.0
    %1049 = vmatprep.subr.mxu0 0.0
    %1050 = vmatpush1.msra.mxu0 0.0
    %1051 = vmatprep.subr.mxu0 0.0
    %1052 = vmatpush1.msra.mxu0 0.0
    %1053 = vmatprep.subr.mxu0 0.0
    %1054 = vmatpush1.msra.mxu0 0.0
    %1055 = vmatprep.subr.mxu0 0.0
    %1056 = vmatpush1.msra.mxu0 0.0
    %1057 = vmatprep.subr.mxu0 0.0
    %1058 = vmatpush1.msra.mxu0 0.0
    %1059 = vmatprep.subr.mxu0 0.0
    %1060 = vmatpush1.msra.mxu0 0.0
    %1061 = vmatprep.subr.mxu0 0.0
    %1062 = vmatpush1.msra.mxu0 0.0
    %1063 = vmatprep.subr.mxu0 0.0
    %1064 = vmatpush1.msra.mxu0 0.0
    %1065 = vmatprep.subr.mxu0 0.0
    %1066 = vmatpush1.msra.mxu0 0.0
    %1067 = vmatprep.subr.mxu0 0.0
    %1068 = vmatpush1.msra.mxu0 0.0
    %1069 = vmatprep.subr.mxu0 0.0
    %1070 = vmatpush1.msra.mxu0 0.0
    %1071 = vmatprep.subr.mxu0 0.0
    %1072 = vmatpush1.msra.mxu0 0.0
    %1073 = vmatprep.subr.mxu0 0.0
    %1074 = vmatpush1.msra.mxu0 0.0
    %1075 = vmatprep.subr.mxu0 0.0
    %1076 = vmatpush1.msra.mxu0 0.0
    %1077 = vmatprep.subr.mxu0 0.0
    %1078 = vmatpush1.msra.mxu0 0.0
    %1079 = vmatprep.subr.mxu0 0.0
    %1080 = vmatpush1.msra.mxu0 0.0
    %1081 = vmatprep.subr.mxu0 0.0
    %1082 = vmatpush1.msra.mxu0 0.0
    %1083 = vmatprep.subr.mxu0 0.0
    %1084 = vmatpush1.msra.mxu0 0.0
    %1085 = vmatprep.subr.mxu0 0.0
    %1086 = vmatpush1.msra.mxu0 0.0
    %1087 = vmatprep.subr.mxu0 0.0
    %1088 = vmatpush1.msra.mxu0 0.0
    %1089 = vmatprep.subr.mxu0 0.0
    %1090 = vmatpush1.msra.mxu0 0.0
    %1091 = vmatprep.subr.mxu0 0.0
    %1092 = vmatpush1.msra.mxu0 0.0
    %1093 = vmatprep.subr.mxu0 0.0
    %1094 = vmatpush1.msra.mxu0 0.0
    %1095 = vmatprep.subr.mxu0 0.0
    %1096 = vmatpush1.msra.mxu0 0.0
    %1097 = vmatprep.subr.mxu0 0.0
    %1098 = vmatpush1.msra.mxu0 0.0
    %1099 = vmatprep.subr.mxu0 0.0
    %1100 = vmatpush1.msra.mxu0 0.0
    %1101 = vmatprep.subr.mxu0 0.0
    %1102 = vmatpush1.msra.mxu0 0.0
    %1103 = vmatprep.subr.mxu0 0.0
    %1104 = vmatpush1.msra.mxu0 0.0
    %1105 = vmatprep.mubr.f32.mxu0 0.0
    %1106 = vmatmul.mubr.f32.gmra.mrb[0].mxu0 %v1039
    %v1107 = vpop.f32.mrb[0].mxu0
    %v1108 = vadd.f32 0.0, %v1107
    %v1109 = vpop.f32.mrb[0].mxu0
    %1110 = vdwg.mxu0
    %1111 = vrot.lane.b32.xlu0 %v162, 64
    %v1112 = vpop.permute.xlu0 %1111
    %v1115 = vsel %vm173, %v878, 0
    %1117 = vmatprep.subr.mxu0 0.0
    %1118 = vmatpush1.msra.mxu0 %v1112
    %1119 = vmatprep.subr.mxu0 0.0
    %1120 = vmatpush1.msra.mxu0 0.0
    %1121 = vmatprep.subr.mxu0 0.0
    %1122 = vmatpush1.msra.mxu0 0.0
    %1123 = vmatprep.subr.mxu0 0.0
    %1124 = vmatpush1.msra.mxu0 0.0
    %1125 = vmatprep.subr.mxu0 0.0
    %1126 = vmatpush1.msra.mxu0 0.0
    %1127 = vmatprep.subr.mxu0 0.0
    %1128 = vmatpush1.msra.mxu0 0.0
    %1129 = vmatprep.subr.mxu0 0.0
    %1130 = vmatpush1.msra.mxu0 0.0
    %1131 = vmatprep.subr.mxu0 0.0
    %1132 = vmatpush1.msra.mxu0 0.0
    %1133 = vmatprep.subr.mxu0 0.0
    %1134 = vmatpush1.msra.mxu0 0.0
    %1135 = vmatprep.subr.mxu0 0.0
    %1136 = vmatpush1.msra.mxu0 0.0
    %1137 = vmatprep.subr.mxu0 0.0
    %1138 = vmatpush1.msra.mxu0 0.0
    %1139 = vmatprep.subr.mxu0 0.0
    %1140 = vmatpush1.msra.mxu0 0.0
    %1141 = vmatprep.subr.mxu0 0.0
    %1142 = vmatpush1.msra.mxu0 0.0
    %1143 = vmatprep.subr.mxu0 0.0
    %1144 = vmatpush1.msra.mxu0 0.0
    %1145 = vmatprep.subr.mxu0 0.0
    %1146 = vmatpush1.msra.mxu0 0.0
    %1147 = vmatprep.subr.mxu0 0.0
    %1148 = vmatpush1.msra.mxu0 0.0
    %1149 = vmatprep.subr.mxu0 0.0
    %1150 = vmatpush1.msra.mxu0 0.0
    %1151 = vmatprep.subr.mxu0 0.0
    %1152 = vmatpush1.msra.mxu0 0.0
    %1153 = vmatprep.subr.mxu0 0.0
    %1154 = vmatpush1.msra.mxu0 0.0
    %1155 = vmatprep.subr.mxu0 0.0
    %1156 = vmatpush1.msra.mxu0 0.0
    %1157 = vmatprep.subr.mxu0 0.0
    %1158 = vmatpush1.msra.mxu0 0.0
    %1159 = vmatprep.subr.mxu0 0.0
    %1160 = vmatpush1.msra.mxu0 0.0
    %1161 = vmatprep.subr.mxu0 0.0
    %1162 = vmatpush1.msra.mxu0 0.0
    %1163 = vmatprep.subr.mxu0 0.0
    %1164 = vmatpush1.msra.mxu0 0.0
    %1165 = vmatprep.subr.mxu0 0.0
    %1166 = vmatpush1.msra.mxu0 0.0
    %1167 = vmatprep.subr.mxu0 0.0
    %1168 = vmatpush1.msra.mxu0 0.0
    %1169 = vmatprep.subr.mxu0 0.0
    %1170 = vmatpush1.msra.mxu0 0.0
    %1171 = vmatprep.subr.mxu0 0.0
    %1172 = vmatpush1.msra.mxu0 0.0
    %1173 = vmatprep.subr.mxu0 0.0
    %1174 = vmatpush1.msra.mxu0 0.0
    %1175 = vmatprep.subr.mxu0 0.0
    %1176 = vmatpush1.msra.mxu0 0.0
    %1177 = vmatprep.subr.mxu0 0.0
    %1178 = vmatpush1.msra.mxu0 0.0
    %1179 = vmatprep.subr.mxu0 0.0
    %1180 = vmatpush1.msra.mxu0 0.0
    %1181 = vmatprep.mubr.f32.mxu0 0.0
    %1182 = vmatmul.mubr.f32.gmra.mrb[0].mxu0 %v1115
    %v1183 = vpop.f32.mrb[0].mxu0
    %v1184 = vadd.f32 0.0, %v1183
    %v1185 = vpop.f32.mrb[0].mxu0
    %1186 = vdwg.mxu0
    %1187 = vrot.lane.b32.xlu0 %v164, 64
    %v1188 = vpop.permute.xlu0 %1187
    %v1191 = vsel %vm173, %v879, 0
    %1193 = vmatprep.subr.mxu0 0.0
    %1194 = vmatpush1.msra.mxu0 %v1188
    %1195 = vmatprep.subr.mxu0 0.0
    %1196 = vmatpush1.msra.mxu0 0.0
    %1197 = vmatprep.subr.mxu0 0.0
    %1198 = vmatpush1.msra.mxu0 0.0
    %1199 = vmatprep.subr.mxu0 0.0
    %1200 = vmatpush1.msra.mxu0 0.0
    %1201 = vmatprep.subr.mxu0 0.0
    %1202 = vmatpush1.msra.mxu0 0.0
    %1203 = vmatprep.subr.mxu0 0.0
    %1204 = vmatpush1.msra.mxu0 0.0
    %1205 = vmatprep.subr.mxu0 0.0
    %1206 = vmatpush1.msra.mxu0 0.0
    %1207 = vmatprep.subr.mxu0 0.0
    %1208 = vmatpush1.msra.mxu0 0.0
    %1209 = vmatprep.subr.mxu0 0.0
    %1210 = vmatpush1.msra.mxu0 0.0
    %1211 = vmatprep.subr.mxu0 0.0
    %1212 = vmatpush1.msra.mxu0 0.0
    %1213 = vmatprep.subr.mxu0 0.0
    %1214 = vmatpush1.msra.mxu0 0.0
    %1215 = vmatprep.subr.mxu0 0.0
    %1216 = vmatpush1.msra.mxu0 0.0
    %1217 = vmatprep.subr.mxu0 0.0
    %1218 = vmatpush1.msra.mxu0 0.0
    %1219 = vmatprep.subr.mxu0 0.0
    %1220 = vmatpush1.msra.mxu0 0.0
    %1221 = vmatprep.subr.mxu0 0.0
    %1222 = vmatpush1.msra.mxu0 0.0
    %1223 = vmatprep.subr.mxu0 0.0
    %1224 = vmatpush1.msra.mxu0 0.0
    %1225 = vmatprep.subr.mxu0 0.0
    %1226 = vmatpush1.msra.mxu0 0.0
    %1227 = vmatprep.subr.mxu0 0.0
    %1228 = vmatpush1.msra.mxu0 0.0
    %1229 = vmatprep.subr.mxu0 0.0
    %1230 = vmatpush1.msra.mxu0 0.0
    %1231 = vmatprep.subr.mxu0 0.0
    %1232 = vmatpush1.msra.mxu0 0.0
    %1233 = vmatprep.subr.mxu0 0.0
    %1234 = vmatpush1.msra.mxu0 0.0
    %1235 = vmatprep.subr.mxu0 0.0
    %1236 = vmatpush1.msra.mxu0 0.0
    %1237 = vmatprep.subr.mxu0 0.0
    %1238 = vmatpush1.msra.mxu0 0.0
    %1239 = vmatprep.subr.mxu0 0.0
    %1240 = vmatpush1.msra.mxu0 0.0
    %1241 = vmatprep.subr.mxu0 0.0
    %1242 = vmatpush1.msra.mxu0 0.0
    %1243 = vmatprep.subr.mxu0 0.0
    %1244 = vmatpush1.msra.mxu0 0.0
    %1245 = vmatprep.subr.mxu0 0.0
    %1246 = vmatpush1.msra.mxu0 0.0
    %1247 = vmatprep.subr.mxu0 0.0
    %1248 = vmatpush1.msra.mxu0 0.0
    %1249 = vmatprep.subr.mxu0 0.0
    %1250 = vmatpush1.msra.mxu0 0.0
    %1251 = vmatprep.subr.mxu0 0.0
    %1252 = vmatpush1.msra.mxu0 0.0
    %1253 = vmatprep.subr.mxu0 0.0
    %1254 = vmatpush1.msra.mxu0 0.0
    %1255 = vmatprep.subr.mxu0 0.0
    %1256 = vmatpush1.msra.mxu0 0.0
    %1257 = vmatprep.mubr.f32.mxu0 0.0
    %1258 = vmatmul.mubr.f32.gmra.mrb[0].mxu0 %v1191
    %v1259 = vpop.f32.mrb[0].mxu0
    %v1260 = vadd.f32 0.0, %v1259
    %v1261 = vpop.f32.mrb[0].mxu0
    %1262 = vdwg.mxu0
    %1263 = vrot.lane.b32.xlu0 %v166, 64
    %v1264 = vpop.permute.xlu0 %1263
    %v1267 = vsel %vm173, %v880, 0
    %1269 = vmatprep.subr.mxu0 0.0
    %1270 = vmatpush1.msra.mxu0 %v1264
    %1271 = vmatprep.subr.mxu0 0.0
    %1272 = vmatpush1.msra.mxu0 0.0
    %1273 = vmatprep.subr.mxu0 0.0
    %1274 = vmatpush1.msra.mxu0 0.0
    %1275 = vmatprep.subr.mxu0 0.0
    %1276 = vmatpush1.msra.mxu0 0.0
    %1277 = vmatprep.subr.mxu0 0.0
    %1278 = vmatpush1.msra.mxu0 0.0
    %1279 = vmatprep.subr.mxu0 0.0
    %1280 = vmatpush1.msra.mxu0 0.0
    %1281 = vmatprep.subr.mxu0 0.0
    %1282 = vmatpush1.msra.mxu0 0.0
    %1283 = vmatprep.subr.mxu0 0.0
    %1284 = vmatpush1.msra.mxu0 0.0
    %1285 = vmatprep.subr.mxu0 0.0
    %1286 = vmatpush1.msra.mxu0 0.0
    %1287 = vmatprep.subr.mxu0 0.0
    %1288 = vmatpush1.msra.mxu0 0.0
    %1289 = vmatprep.subr.mxu0 0.0
    %1290 = vmatpush1.msra.mxu0 0.0
    %1291 = vmatprep.subr.mxu0 0.0
    %1292 = vmatpush1.msra.mxu0 0.0
    %1293 = vmatprep.subr.mxu0 0.0
    %1294 = vmatpush1.msra.mxu0 0.0
    %1295 = vmatprep.subr.mxu0 0.0
    %1296 = vmatpush1.msra.mxu0 0.0
    %1297 = vmatprep.subr.mxu0 0.0
    %1298 = vmatpush1.msra.mxu0 0.0
    %1299 = vmatprep.subr.mxu0 0.0
    %1300 = vmatpush1.msra.mxu0 0.0
    %1301 = vmatprep.subr.mxu0 0.0
    %1302 = vmatpush1.msra.mxu0 0.0
    %1303 = vmatprep.subr.mxu0 0.0
    %1304 = vmatpush1.msra.mxu0 0.0
    %1305 = vmatprep.subr.mxu0 0.0
    %1306 = vmatpush1.msra.mxu0 0.0
    %1307 = vmatprep.subr.mxu0 0.0
    %1308 = vmatpush1.msra.mxu0 0.0
    %1309 = vmatprep.subr.mxu0 0.0
    %1310 = vmatpush1.msra.mxu0 0.0
    %1311 = vmatprep.subr.mxu0 0.0
    %1312 = vmatpush1.msra.mxu0 0.0
    %1313 = vmatprep.subr.mxu0 0.0
    %1314 = vmatpush1.msra.mxu0 0.0
    %1315 = vmatprep.subr.mxu0 0.0
    %1316 = vmatpush1.msra.mxu0 0.0
    %1317 = vmatprep.subr.mxu0 0.0
    %1318 = vmatpush1.msra.mxu0 0.0
    %1319 = vmatprep.subr.mxu0 0.0
    %1320 = vmatpush1.msra.mxu0 0.0
    %1321 = vmatprep.subr.mxu0 0.0
    %1322 = vmatpush1.msra.mxu0 0.0
    %1323 = vmatprep.subr.mxu0 0.0
    %1324 = vmatpush1.msra.mxu0 0.0
    %1325 = vmatprep.subr.mxu0 0.0
    %1326 = vmatpush1.msra.mxu0 0.0
    %1327 = vmatprep.subr.mxu0 0.0
    %1328 = vmatpush1.msra.mxu0 0.0
    %1329 = vmatprep.subr.mxu0 0.0
    %1330 = vmatpush1.msra.mxu0 0.0
    %1331 = vmatprep.subr.mxu0 0.0
    %1332 = vmatpush1.msra.mxu0 0.0
    %1333 = vmatprep.mubr.f32.mxu0 0.0
    %1334 = vmatmul.mubr.f32.gmra.mrb[0].mxu0 %v1267
    %v1335 = vpop.f32.mrb[0].mxu0
    %v1336 = vadd.f32 0.0, %v1335
    %v1337 = vpop.f32.mrb[0].mxu0
    %1338 = vdwg.mxu0
    %1339 = vrot.lane.b32.xlu0 %v168, 64
    %v1340 = vpop.permute.xlu0 %1339
    %v1343 = vsel %vm173, %v881, 0
    %1345 = vmatprep.subr.mxu0 0.0
    %1346 = vmatpush1.msra.mxu0 %v1340
    %1347 = vmatprep.subr.mxu0 0.0
    %1348 = vmatpush1.msra.mxu0 0.0
    %1349 = vmatprep.subr.mxu0 0.0
    %1350 = vmatpush1.msra.mxu0 0.0
    %1351 = vmatprep.subr.mxu0 0.0
    %1352 = vmatpush1.msra.mxu0 0.0
    %1353 = vmatprep.subr.mxu0 0.0
    %1354 = vmatpush1.msra.mxu0 0.0
    %1355 = vmatprep.subr.mxu0 0.0
    %1356 = vmatpush1.msra.mxu0 0.0
    %1357 = vmatprep.subr.mxu0 0.0
    %1358 = vmatpush1.msra.mxu0 0.0
    %1359 = vmatprep.subr.mxu0 0.0
    %1360 = vmatpush1.msra.mxu0 0.0
    %1361 = vmatprep.subr.mxu0 0.0
    %1362 = vmatpush1.msra.mxu0 0.0
    %1363 = vmatprep.subr.mxu0 0.0
    %1364 = vmatpush1.msra.mxu0 0.0
    %1365 = vmatprep.subr.mxu0 0.0
    %1366 = vmatpush1.msra.mxu0 0.0
    %1367 = vmatprep.subr.mxu0 0.0
    %1368 = vmatpush1.msra.mxu0 0.0
    %1369 = vmatprep.subr.mxu0 0.0
    %1370 = vmatpush1.msra.mxu0 0.0
    %1371 = vmatprep.subr.mxu0 0.0
    %1372 = vmatpush1.msra.mxu0 0.0
    %1373 = vmatprep.subr.mxu0 0.0
    %1374 = vmatpush1.msra.mxu0 0.0
    %1375 = vmatprep.subr.mxu0 0.0
    %1376 = vmatpush1.msra.mxu0 0.0
    %1377 = vmatprep.subr.mxu0 0.0
    %1378 = vmatpush1.msra.mxu0 0.0
    %1379 = vmatprep.subr.mxu0 0.0
    %1380 = vmatpush1.msra.mxu0 0.0
    %1381 = vmatprep.subr.mxu0 0.0
    %1382 = vmatpush1.msra.mxu0 0.0
    %1383 = vmatprep.subr.mxu0 0.0
    %1384 = vmatpush1.msra.mxu0 0.0
    %1385 = vmatprep.subr.mxu0 0.0
    %1386 = vmatpush1.msra.mxu0 0.0
    %1387 = vmatprep.subr.mxu0 0.0
    %1388 = vmatpush1.msra.mxu0 0.0
    %1389 = vmatprep.subr.mxu0 0.0
    %1390 = vmatpush1.msra.mxu0 0.0
    %1391 = vmatprep.subr.mxu0 0.0
    %1392 = vmatpush1.msra.mxu0 0.0
    %1393 = vmatprep.subr.mxu0 0.0
    %1394 = vmatpush1.msra.mxu0 0.0
    %1395 = vmatprep.subr.mxu0 0.0
    %1396 = vmatpush1.msra.mxu0 0.0
    %1397 = vmatprep.subr.mxu0 0.0
    %1398 = vmatpush1.msra.mxu0 0.0
    %1399 = vmatprep.subr.mxu0 0.0
    %1400 = vmatpush1.msra.mxu0 0.0
    %1401 = vmatprep.subr.mxu0 0.0
    %1402 = vmatpush1.msra.mxu0 0.0
    %1403 = vmatprep.subr.mxu0 0.0
    %1404 = vmatpush1.msra.mxu0 0.0
    %1405 = vmatprep.subr.mxu0 0.0
    %1406 = vmatpush1.msra.mxu0 0.0
    %1407 = vmatprep.subr.mxu0 0.0
    %1408 = vmatpush1.msra.mxu0 0.0
    %1409 = vmatprep.mubr.f32.mxu0 0.0
    %1410 = vmatmul.mubr.f32.gmra.mrb[0].mxu0 %v1343
    %v1411 = vpop.f32.mrb[0].mxu0
    %v1412 = vadd.f32 0.0, %v1411
    %v1413 = vpop.f32.mrb[0].mxu0
    %1414 = vdwg.mxu0
    %1415 = vrot.lane.b32.xlu0 %v170, 64
    %v1416 = vpop.permute.xlu0 %1415
    %v1419 = vsel %vm173, %v882, 0
    %1421 = vmatprep.subr.mxu0 0.0
    %1422 = vmatpush1.msra.mxu0 %v1416
    %1423 = vmatprep.subr.mxu0 0.0
    %1424 = vmatpush1.msra.mxu0 0.0
    %1425 = vmatprep.subr.mxu0 0.0
    %1426 = vmatpush1.msra.mxu0 0.0
    %1427 = vmatprep.subr.mxu0 0.0
    %1428 = vmatpush1.msra.mxu0 0.0
    %1429 = vmatprep.subr.mxu0 0.0
    %1430 = vmatpush1.msra.mxu0 0.0
    %1431 = vmatprep.subr.mxu0 0.0
    %1432 = vmatpush1.msra.mxu0 0.0
    %1433 = vmatprep.subr.mxu0 0.0
    %1434 = vmatpush1.msra.mxu0 0.0
    %1435 = vmatprep.subr.mxu0 0.0
    %1436 = vmatpush1.msra.mxu0 0.0
    %1437 = vmatprep.subr.mxu0 0.0
    %1438 = vmatpush1.msra.mxu0 0.0
    %1439 = vmatprep.subr.mxu0 0.0
    %1440 = vmatpush1.msra.mxu0 0.0
    %1441 = vmatprep.subr.mxu0 0.0
    %1442 = vmatpush1.msra.mxu0 0.0
    %1443 = vmatprep.subr.mxu0 0.0
    %1444 = vmatpush1.msra.mxu0 0.0
    %1445 = vmatprep.subr.mxu0 0.0
    %1446 = vmatpush1.msra.mxu0 0.0
    %1447 = vmatprep.subr.mxu0 0.0
    %1448 = vmatpush1.msra.mxu0 0.0
    %1449 = vmatprep.subr.mxu0 0.0
    %1450 = vmatpush1.msra.mxu0 0.0
    %1451 = vmatprep.subr.mxu0 0.0
    %1452 = vmatpush1.msra.mxu0 0.0
    %1453 = vmatprep.subr.mxu0 0.0
    %1454 = vmatpush1.msra.mxu0 0.0
    %1455 = vmatprep.subr.mxu0 0.0
    %1456 = vmatpush1.msra.mxu0 0.0
    %1457 = vmatprep.subr.mxu0 0.0
    %1458 = vmatpush1.msra.mxu0 0.0
    %1459 = vmatprep.subr.mxu0 0.0
    %1460 = vmatpush1.msra.mxu0 0.0
    %1461 = vmatprep.subr.mxu0 0.0
    %1462 = vmatpush1.msra.mxu0 0.0
    %1463 = vmatprep.subr.mxu0 0.0
    %1464 = vmatpush1.msra.mxu0 0.0
    %1465 = vmatprep.subr.mxu0 0.0
    %1466 = vmatpush1.msra.mxu0 0.0
    %1467 = vmatprep.subr.mxu0 0.0
    %1468 = vmatpush1.msra.mxu0 0.0
    %1469 = vmatprep.subr.mxu0 0.0
    %1470 = vmatpush1.msra.mxu0 0.0
    %1471 = vmatprep.subr.mxu0 0.0
    %1472 = vmatpush1.msra.mxu0 0.0
    %1473 = vmatprep.subr.mxu0 0.0
    %1474 = vmatpush1.msra.mxu0 0.0
    %1475 = vmatprep.subr.mxu0 0.0
    %1476 = vmatpush1.msra.mxu0 0.0
    %1477 = vmatprep.subr.mxu0 0.0
    %1478 = vmatpush1.msra.mxu0 0.0
    %1479 = vmatprep.subr.mxu0 0.0
    %1480 = vmatpush1.msra.mxu0 0.0
    %1481 = vmatprep.subr.mxu0 0.0
    %1482 = vmatpush1.msra.mxu0 0.0
    %1483 = vmatprep.subr.mxu0 0.0
    %1484 = vmatpush1.msra.mxu0 0.0
    %1485 = vmatprep.mubr.f32.mxu0 0.0
    %1486 = vmatmul.mubr.f32.gmra.mrb[0].mxu0 %v1419
    %v1487 = vpop.f32.mrb[0].mxu0
    %v1488 = vadd.f32 0.0, %v1487
    %v1489 = vpop.f32.mrb[0].mxu0
    %1490 = vdwg.mxu0
    %1493 = vrot.lane.b32.xlu0 %v1108, 8
    %v1494 = vpop.permute.xlu0 %1493
    %1495 = vrot.lane.b32.xlu0 %v1184, 8
    %v1496 = vpop.permute.xlu0 %1495
    %1501 = vrot.lane.b32.xlu0 %v1260, 16
    %v1502 = vpop.permute.xlu0 %1501
    %1503 = vrot.lane.b32.xlu0 %v1336, 16
    %v1504 = vpop.permute.xlu0 %1503
    %1509 = vrot.lane.b32.xlu0 %v1412, 24
    %v1510 = vpop.permute.xlu0 %1509
    %1511 = vrot.lane.b32.xlu0 %v1488, 24
    %v1512 = vpop.permute.xlu0 %1511
    %v1515 = vsel %vm173, %v956, %v1494
    %v1516 = vsel %vm173, %v1032, %v1496
    %vm1517 = vcmask 130048
    %v1518 = vsel %vm1517, %v1515, %v1502
    %v1519 = vsel %vm1517, %v1516, %v1504
    %vm1520 = vcmask 195584
    %v1521 = vsel %vm1520, %v1518, %v1510
    %v1522 = vsel %vm1520, %v1519, %v1512
    %v1523 = vld [vmem:[#allocation7] sm:$0xff]
    %v1524 = vld [vmem:[#allocation7 + $0x8] sm:$0xff]
    %v1525 = vld [vmem:[#allocation7 + $0x10] sm:$0xff]
    %v1526 = vld [vmem:[#allocation7 + $0x18] sm:$0xff]
    %v1527 = vld [vmem:[%s4] sm:$0x1]
    %v1529 = vlaneseq
    %v1530 = vshrl.u32 %v1529, 7
    %v1531 = vsub.s32 0, %v1530
    %v1532 = vrot.slane %v1527, %v1531
    %v1535 = vsel %vm75, %v1521, 0
    %v1538 = vsel %vm75, %v1522, 0
    %1540 = vmatprep.subr.mxu0 0.0
    %1541 = vmatpush1.msra.mxu0 %v1523
    %1542 = vmatprep.subr.mxu0 0.0
    %1543 = vmatpush1.msra.mxu0 %v1524
    %1544 = vmatprep.subr.mxu0 0.0
    %1545 = vmatpush1.msra.mxu0 %v1525
    %1546 = vmatprep.subr.mxu0 0.0
    %1547 = vmatpush1.msra.mxu0 %v1526
    %1548 = vmatprep.subr.mxu0 0.0
    %1549 = vmatpush1.msra.mxu0 0.0
    %1550 = vmatprep.subr.mxu0 0.0
    %1551 = vmatpush1.msra.mxu0 0.0
    %1552 = vmatprep.subr.mxu0 0.0
    %1553 = vmatpush1.msra.mxu0 0.0
    %1554 = vmatprep.subr.mxu0 0.0
    %1555 = vmatpush1.msra.mxu0 0.0
    %1556 = vmatprep.subr.mxu0 0.0
    %1557 = vmatpush1.msra.mxu0 0.0
    %1558 = vmatprep.subr.mxu0 0.0
    %1559 = vmatpush1.msra.mxu0 0.0
    %1560 = vmatprep.subr.mxu0 0.0
    %1561 = vmatpush1.msra.mxu0 0.0
    %1562 = vmatprep.subr.mxu0 0.0
    %1563 = vmatpush1.msra.mxu0 0.0
    %1564 = vmatprep.subr.mxu0 0.0
    %1565 = vmatpush1.msra.mxu0 0.0
    %1566 = vmatprep.subr.mxu0 0.0
    %1567 = vmatpush1.msra.mxu0 0.0
    %1568 = vmatprep.subr.mxu0 0.0
    %1569 = vmatpush1.msra.mxu0 0.0
    %1570 = vmatprep.subr.mxu0 0.0
    %1571 = vmatpush1.msra.mxu0 0.0
    %1572 = vmatprep.subr.mxu0 0.0
    %1573 = vmatpush1.msra.mxu0 0.0
    %1574 = vmatprep.subr.mxu0 0.0
    %1575 = vmatpush1.msra.mxu0 0.0
    %1576 = vmatprep.subr.mxu0 0.0
    %1577 = vmatpush1.msra.mxu0 0.0
    %1578 = vmatprep.subr.mxu0 0.0
    %1579 = vmatpush1.msra.mxu0 0.0
    %1580 = vmatprep.subr.mxu0 0.0
    %1581 = vmatpush1.msra.mxu0 0.0
    %1582 = vmatprep.subr.mxu0 0.0
    %1583 = vmatpush1.msra.mxu0 0.0
    %1584 = vmatprep.subr.mxu0 0.0
    %1585 = vmatpush1.msra.mxu0 0.0
    %1586 = vmatprep.subr.mxu0 0.0
    %1587 = vmatpush1.msra.mxu0 0.0
    %1588 = vmatprep.subr.mxu0 0.0
    %1589 = vmatpush1.msra.mxu0 0.0
    %1590 = vmatprep.subr.mxu0 0.0
    %1591 = vmatpush1.msra.mxu0 0.0
    %1592 = vmatprep.subr.mxu0 0.0
    %1593 = vmatpush1.msra.mxu0 0.0
    %1594 = vmatprep.subr.mxu0 0.0
    %1595 = vmatpush1.msra.mxu0 0.0
    %1596 = vmatprep.subr.mxu0 0.0
    %1597 = vmatpush1.msra.mxu0 0.0
    %1598 = vmatprep.subr.mxu0 0.0
    %1599 = vmatpush1.msra.mxu0 0.0
    %1600 = vmatprep.subr.mxu0 0.0
    %1601 = vmatpush1.msra.mxu0 0.0
    %1602 = vmatprep.subr.mxu0 0.0
    %1603 = vmatpush1.msra.mxu0 0.0
    %1604 = vmatprep.mubr.f32.mxu0 0.0
    %1605 = vmatmul.mubr.f32.gmra.mrb[0].mxu0 %v1535
    %v1606 = vpop.f32.mrb[0].mxu0
    %v1607 = vadd.f32 %v1532, %v1606
    %v1608 = vpop.f32.mrb[0].mxu0
    %1609 = vmatprep.mubr.f32.mxu0 0.0
    %1610 = vmatmul.mubr.f32.gmra.mrb[0].mxu0 %v1538
    %v1611 = vpop.f32.mrb[0].mxu0
    %v1612 = vadd.f32 %v1532, %v1611
    %v1613 = vpop.f32.mrb[0].mxu0
    %1614 = vdwg.mxu0
    %1615 = vst.msk [vmem:[#allocation8] sm:$0xff] %vm75, %v1607
    %1616 = vst.msk [vmem:[#allocation8 + $0x8] sm:$0xff] %vm75, %v1612
    // Predicated region
    $region34: #{tpu_custom_call.1} parent=1 // pred_check
      _
    $region35: #{tpu_custom_call.1} parent=1 // pred_check_branch
      %1618 = sbr.rel (0) target = $region37
    $region36: #{tpu_custom_call.1} parent=1 // pred_region
      %s1620 = ssub.s32 256, 256
      %1621 = vsyncadd [#allocation4], %s1620
      %s1622 = sshll.u32 [#allocation8], 4
      %s1623 = int_to_ptr.vmem [resolvable:$true] %s1622
      %1628 = dma.vmem_to_hbm [thread:$0]  %s1623, 256, %s5, [#allocation4], 128, 128, 8
    $region37: #{tpu_custom_call.1} parent=1 // pred_fallthru
      _
    // Predicated region
    $region38: #{tpu_custom_call.1} parent=1 // pred_check
      _
    $region39: #{tpu_custom_call.1} parent=1 // pred_check_branch
      %1630 = sbr.rel (0) target = $region41
    $region40: #{tpu_custom_call.1} parent=1 // pred_region
      %1631 = dma.done [#allocation4], 256
    $region41: #{tpu_custom_call.1} parent=1 // pred_fallthru
      _
    %1632 = vsyncpa [#allocation3], 1
    %1633 = vsyncpa [#allocation6], 1
    %1634 = vsyncpa [#allocation4], 1

</llo_original>
